<compile_context>
chip_gen: v7x
topology: tpu7x:2x2x1
jax: 0.10.0
libtpu: 0.0.40
codegen_flags: <defaults>
</compile_context>

<pallas_src>
import jax
import jax.numpy as jnp
from jax.experimental import pallas as pl
from jax.experimental.pallas import tpu as pltpu


# ----------------------------- Pallas kernel -------------------------------

def _multimodal_kernel(
    cls_ref,            # (TB, Ht)       surrogate BERT CLS hidden state (f32)
    img1_ref,           # (TB, C, THW)   image1 spatial tile (f32)
    img2_ref,           # (TB, C, THW)   image2 spatial tile (f32)
    wp_ref, bp_ref,     # BERT pooler dense: (Ht, Ht) bf16, (1, Ht) f32
    wc1_ref, wc2_ref,   # 1x1 channel-mix weights (pre-scaled by 1/HW): (C, F) bf16
    w0t_ref, b0t_ref,   # text projection first layer: (Ht, P) bf16, (1, P) f32
    w0i_ref, b0i_ref,   # image projection first layer: (2F, P) bf16, (1, P) f32
    wl_ref, bl_ref,     # stacked projection layers: (L, 2, P, P) bf16, (L, 2, 1, P) f32
    g_ref, be_ref,      # stacked LayerNorm gamma/beta: (L, 2, 1, P) f32
    wcls_ref, bcls_ref, # classifier (lane-padded): (2P, NCpad) bf16, (1, NCpad) f32
    out_ref,            # (TB, NCpad) f32
    acc1_ref, acc2_ref, # (TB, C) f32 spatial-sum accumulators (scratch)
):
    f32 = jnp.float32
    bf16 = jnp.bfloat16
    k = pl.program_id(1)

    # ---- spatial-sum accumulation over the HW grid axis (global avg pool) ----
    @pl.when(k == 0)
    def _():
        acc1_ref[...] = jnp.zeros_like(acc1_ref)
        acc2_ref[...] = jnp.zeros_like(acc2_ref)

    acc1_ref[...] += jnp.sum(img1_ref[...], axis=2)
    acc2_ref[...] += jnp.sum(img2_ref[...], axis=2)

    # ---- finalize: all the dense compute happens once, on the last HW tile ---
    @pl.when(k == pl.num_programs(1) - 1)
    def _():
        def mm(a, w):          # bf16 MXU matmul, f32 accumulation
            return jnp.dot(a.astype(bf16), w, preferred_element_type=f32)

        def bmm(a, w):         # batched (text/image stacked) matmul
            return jnp.einsum("sbp,spq->sbq", a.astype(bf16), w,
                              preferred_element_type=f32)

        def gelu(x):
            # TODO(synk): PyTorch nn.GELU() default is exact erf GELU; tanh
            # approximation used here (EUP-friendly, ~1e-3 relative difference).
            c = 0.7978845608028654  # sqrt(2/pi)
            return 0.5 * x * (1.0 + jnp.tanh(c * (x + 0.044715 * x * x * x)))

        def layer_norm(x, gamma, beta, eps=1e-5):
            mu = jnp.mean(x, axis=-1, keepdims=True)
            var = jnp.mean((x - mu) ** 2, axis=-1, keepdims=True)
            return (x - mu) * jax.lax.rsqrt(var + eps) * gamma + beta

        # ----- text branch: BERT pooler (dense + tanh) then first projection --
        pooled_txt = jnp.tanh(mm(cls_ref[...], wp_ref[...]) + bp_ref[...])
        y_t = mm(pooled_txt, w0t_ref[...]) + b0t_ref[...]                 # (TB, P)

        # ----- image branch: 1x1 channel mix on the pooled features -----------
        # acc holds the spatial SUM; the 1/HW factor is folded into wc1/wc2.
        feat1 = mm(acc1_ref[...], wc1_ref[...])                           # (TB, F)
        feat2 = mm(acc2_ref[...], wc2_ref[...])                           # (TB, F)
        F = wc1_ref.shape[1]
        w0i = w0i_ref[...]
        # torch.cat((out1, out2), dim=1) @ W  ==  split matmul (F is 8-aligned).
        y_i = mm(feat1, w0i[:F, :]) + mm(feat2, w0i[F:, :]) + b0i_ref[...]

        # ----- shared projection stacks, text/image stacked on a batch axis ---
        y = jnp.stack([y_t, y_i], axis=0)                                 # (2, TB, P)
        wl, bl = wl_ref[...], bl_ref[...]
        g, be = g_ref[...], be_ref[...]
        for l in range(wl.shape[0]):                                      # L static
            h = bmm(gelu(y), wl[l]) + bl[l]       # nn.Dropout = identity (eval)
            y = layer_norm(h + y, g[l], be[l])

        # ----- classifier on torch.cat((text, image), dim=1): split matmul ----
        P = y.shape[-1]
        wcls = wcls_ref[...]
        logits = mm(y[0], wcls[:P, :]) + mm(y[1], wcls[P:, :]) + bcls_ref[...]
        out_ref[...] = logits.astype(out_ref.dtype)


# ------------------------------ wrapper -------------------------------------

def multimodal_forward(params, input_ids, token_type_ids, attention_mask,
                       image1, image2):
    # TODO(synk): pretrained BERT transformer is not translatable; the CLS
    # token embedding lookup is used as a surrogate for the transformer's CLS
    # hidden state (token_type_ids / attention_mask unused by the surrogate).
    del token_type_ids, attention_mask
    cls_hidden = params["emb"][input_ids[:, 0]]                           # (B, Ht)

    # TODO(synk): pretrained ResNet50 conv trunk is not translatable; only its
    # tail (1x1 channel mix + global average pool) is computed in the kernel.
    B, C, H, W = image1.shape
    HW = H * W
    if image1.dtype != jnp.float32:
        image1 = image1.astype(jnp.float32)
    if image2.dtype != jnp.float32:
        image2 = image2.astype(jnp.float32)
    img1 = image1.reshape(B, C, HW)      # contiguous row-major reshape (free)
    img2 = image2.reshape(B, C, HW)

    bf16 = jnp.bfloat16
    Ht = params["wp"].shape[0]
    F = params["wc1"].shape[1]
    P = params["w0t"].shape[1]
    NC = params["wcls"].shape[-1]
    # Split-matmul row offsets must stay sublane (8)-aligned to remain free views.
    assert F % 8 == 0 and P % 8 == 0, "F and P must be multiples of 8"

    # Weights -> bf16 for the MXU fast path; fold 1/HW pooling norm into wc*.
    wp = params["wp"].astype(bf16)
    wc1 = (params["wc1"] / HW).astype(bf16)
    wc2 = (params["wc2"] / HW).astype(bf16)
    w0t = params["w0t"].astype(bf16)
    w0i = params["w0i"].astype(bf16)
    # Stack text/image projection stacks so the kernel runs them as one batched
    # (2, B, P) pipeline (better sublane fill for GELU/LayerNorm/matmuls).
    wl = jnp.stack([params["wlt"], params["wli"]], axis=1).astype(bf16)   # (L,2,P,P)
    bl = jnp.stack([params["blt"], params["bli"]], axis=1)                # (L,2,1,P)
    g = jnp.stack([params["gt"], params["gi"]], axis=1)
    be = jnp.stack([params["bet"], params["bei"]], axis=1)
    # Lane-dense classifier output: pad num_class up to a multiple of 128.
    NCpad = ((NC + 127) // 128) * 128
    wcls = (jnp.zeros((2 * P, NCpad), jnp.float32)
            .at[:, :NC].set(params["wcls"]).astype(bf16))
    bcls = jnp.zeros((1, NCpad), jnp.float32).at[:, :NC].set(params["bcls"])

    # Tiling: batch tiles = 'parallel' (megacore) axis, HW tiles = 'arbitrary'
    # reduction axis (bounds image VMEM residency to TB*C*THW per buffer).
    TB = 8 if B % 8 == 0 else B
    THW = 128 if HW % 128 == 0 else HW
    grid = (B // TB, HW // THW)

    def _full(a):
        n = a.ndim
        return pl.BlockSpec(a.shape, lambda bi, k, n=n: (0,) * n)

    weights = (wp, params["bp"], wc1, wc2, w0t, params["b0t"],
               w0i, params["b0i"], wl, bl, g, be, wcls, bcls)

    in_specs = [
        pl.BlockSpec((TB, Ht), lambda bi, k: (bi, 0)),          # cls_hidden
        pl.BlockSpec((TB, C, THW), lambda bi, k: (bi, 0, k)),   # img1 tile
        pl.BlockSpec((TB, C, THW), lambda bi, k: (bi, 0, k)),   # img2 tile
    ] + [_full(w) for w in weights]

    out = pl.pallas_call(
        _multimodal_kernel,
        out_shape=jax.ShapeDtypeStruct((B, NCpad), jnp.float32),
        grid_spec=pltpu.PrefetchScalarGridSpec(
            num_scalar_prefetch=0,
            grid=grid,
            in_specs=in_specs,
            out_specs=pl.BlockSpec((TB, NCpad), lambda bi, k: (bi, 0)),
            scratch_shapes=[pltpu.VMEM((TB, C), jnp.float32),
                            pltpu.VMEM((TB, C), jnp.float32)],
        ),
        compiler_params=pltpu.CompilerParams(
            dimension_semantics=("parallel", "arbitrary")),
    )(cls_hidden, img1, img2, *weights)
    return out[:, :NC]


# --------------------------- parameter init ---------------------------------

def init_params(key, *, vocab=50, text_hidden=32, img_channels=4, img_feat=16,
                proj_dim=32, num_layers=2, num_class=4):
    ks = iter(jax.random.split(key, 16))

    def dense(k, fan_in, fan_out):
        return (jax.random.normal(k, (fan_in, fan_out), jnp.float32)
                / jnp.sqrt(jnp.float32(fan_in)))

    def bias(k, n):
        return 0.01 * jax.random.normal(k, (1, n), jnp.float32)

    P, L = proj_dim, num_layers
    params = {
        "emb":  jax.random.normal(next(ks), (vocab, text_hidden), jnp.float32) * 0.02,
        "wp":   dense(next(ks), text_hidden, text_hidden),
        "bp":   bias(next(ks), text_hidden),
        "wc1":  dense(next(ks), img_channels, img_feat),
        "wc2":  dense(next(ks), img_channels, img_feat),
        "w0t":  dense(next(ks), text_hidden, P),
        "b0t":  bias(next(ks), P),
        "wlt":  (jax.random.normal(next(ks), (L, P, P), jnp.float32)
                 / jnp.sqrt(jnp.float32(P))),
        "blt":  0.01 * jax.random.normal(next(ks), (L, 1, P), jnp.float32),
        "gt":   jnp.ones((L, 1, P), jnp.float32),     # LayerNorm default init
        "bet":  jnp.zeros((L, 1, P), jnp.float32),
        "w0i":  dense(next(ks), 2 * img_feat, P),
        "b0i":  bias(next(ks), P),
        "wli":  (jax.random.normal(next(ks), (L, P, P), jnp.float32)
                 / jnp.sqrt(jnp.float32(P))),
        "bli":  0.01 * jax.random.normal(next(ks), (L, 1, P), jnp.float32),
        "gi":   jnp.ones((L, 1, P), jnp.float32),
        "bei":  jnp.zeros((L, 1, P), jnp.float32),
        "wcls": dense(next(ks), 2 * P, num_class),
        "bcls": bias(next(ks), num_class),
    }
    return params


# ------------------------------- main ----------------------------------------

if __name__ == "__main__":
    B, SEQ, VOCAB = 2, 8, 50
    C, H, W = 4, 16, 16

    key = jax.random.PRNGKey(0)
    k_par, k_ids, k_im1, k_im2 = jax.random.split(key, 4)

    params = init_params(k_par, vocab=VOCAB, text_hidden=32, img_channels=C,
                         img_feat=16, proj_dim=32, num_layers=2, num_class=4)

    input_ids = jax.random.randint(k_ids, (B, SEQ), 0, VOCAB, dtype=jnp.int32)
    token_type_ids = jnp.zeros((B, SEQ), jnp.int32)
    attention_mask = jnp.ones((B, SEQ), jnp.int32)
    image1 = jax.random.normal(k_im1, (B, C, H, W), jnp.float32)   # NCHW
    image2 = jax.random.normal(k_im2, (B, C, H, W), jnp.float32)   # NCHW

    out = multimodal_forward(params, input_ids, token_type_ids, attention_mask,
                             image1, image2)
    out = jax.block_until_ready(out)
    assert out.shape == (B, 4) and out.dtype == jnp.float32
    print("KERNEL_OK")
</pallas_src>

<mosaic_0001>
module attributes {stable_mosaic.version = 11 : i64} {
  func.func @_multimodal_kernel(%arg0: i32, %arg1: i32, %arg2: memref<2x32xf32, #tpu.memory_space<vmem>>, %arg3: memref<2x4x128xf32, #tpu.memory_space<vmem>>, %arg4: memref<2x4x128xf32, #tpu.memory_space<vmem>>, %arg5: memref<32x32xbf16, #tpu.memory_space<vmem>>, %arg6: memref<1x32xf32, #tpu.memory_space<vmem>>, %arg7: memref<4x16xbf16, #tpu.memory_space<vmem>>, %arg8: memref<4x16xbf16, #tpu.memory_space<vmem>>, %arg9: memref<32x32xbf16, #tpu.memory_space<vmem>>, %arg10: memref<1x32xf32, #tpu.memory_space<vmem>>, %arg11: memref<32x32xbf16, #tpu.memory_space<vmem>>, %arg12: memref<1x32xf32, #tpu.memory_space<vmem>>, %arg13: memref<2x2x32x32xbf16, #tpu.memory_space<vmem>>, %arg14: memref<2x2x1x32xf32, #tpu.memory_space<vmem>>, %arg15: memref<2x2x1x32xf32, #tpu.memory_space<vmem>>, %arg16: memref<2x2x1x32xf32, #tpu.memory_space<vmem>>, %arg17: memref<64x128xbf16, #tpu.memory_space<vmem>>, %arg18: memref<1x128xf32, #tpu.memory_space<vmem>>, %arg19: memref<2x128xf32, #tpu.memory_space<vmem>>, %arg20: memref<2x4xf32, #tpu.memory_space<vmem>>, %arg21: memref<2x4xf32, #tpu.memory_space<vmem>>) attributes {dimension_semantics = [#tpu.dimension_semantics<parallel>, #tpu.dimension_semantics<arbitrary>], iteration_bounds = array<i64: 1, 2>, scalar_prefetch = 0 : i64, scratch_operands = 2 : i64, tpu.core_type = #tpu.core_type<tc>, window_params = [{transform_indices = @transform_0, window_bounds = array<i64: 2, 32>}, {transform_indices = @transform_1, window_bounds = array<i64: 2, 4, 128>}, {transform_indices = @transform_2, window_bounds = array<i64: 2, 4, 128>}, {pipeline_mode = #tpu.pipeline_mode<synchronous>, transform_indices = @transform_3, window_bounds = array<i64: 32, 32>}, {pipeline_mode = #tpu.pipeline_mode<synchronous>, transform_indices = @transform_4, window_bounds = array<i64: 1, 32>}, {pipeline_mode = #tpu.pipeline_mode<synchronous>, transform_indices = @transform_5, window_bounds = array<i64: 4, 16>}, {pipeline_mode = #tpu.pipeline_mode<synchronous>, transform_indices = @transform_6, window_bounds = array<i64: 4, 16>}, {pipeline_mode = #tpu.pipeline_mode<synchronous>, transform_indices = @transform_7, window_bounds = array<i64: 32, 32>}, {pipeline_mode = #tpu.pipeline_mode<synchronous>, transform_indices = @transform_8, window_bounds = array<i64: 1, 32>}, {pipeline_mode = #tpu.pipeline_mode<synchronous>, transform_indices = @transform_9, window_bounds = array<i64: 32, 32>}, {pipeline_mode = #tpu.pipeline_mode<synchronous>, transform_indices = @transform_10, window_bounds = array<i64: 1, 32>}, {pipeline_mode = #tpu.pipeline_mode<synchronous>, transform_indices = @transform_11, window_bounds = array<i64: 2, 2, 32, 32>}, {pipeline_mode = #tpu.pipeline_mode<synchronous>, transform_indices = @transform_12, window_bounds = array<i64: 2, 2, 1, 32>}, {pipeline_mode = #tpu.pipeline_mode<synchronous>, transform_indices = @transform_13, window_bounds = array<i64: 2, 2, 1, 32>}, {pipeline_mode = #tpu.pipeline_mode<synchronous>, transform_indices = @transform_14, window_bounds = array<i64: 2, 2, 1, 32>}, {pipeline_mode = #tpu.pipeline_mode<synchronous>, transform_indices = @transform_15, window_bounds = array<i64: 64, 128>}, {pipeline_mode = #tpu.pipeline_mode<synchronous>, transform_indices = @transform_16, window_bounds = array<i64: 1, 128>}, {transform_indices = @transform_17, window_bounds = array<i64: 2, 128>}]} {
    %c0_i32 = arith.constant 0 : i32
    %0 = arith.cmpi eq, %arg1, %c0_i32 : i32
    %1 = arith.extui %0 : i1 to i32
    %c0_i32_0 = arith.constant 0 : i32
    %2 = arith.cmpi ne, %1, %c0_i32_0 : i32
    scf.if %2 {
      %cst_16 = arith.constant 0.000000e+00 : f32
      %16 = vector.broadcast %cst_16 : f32 to vector<2x4xf32>
      %c0_17 = arith.constant 0 : index
      %c0_18 = arith.constant 0 : index
      %17 = vector.load %arg20[%c0_17, %c0_18] : memref<2x4xf32, #tpu.memory_space<vmem>>, vector<2x4xf32>
      tpu.vector_store %arg20[%c0_17, %c0_18], %16 {strides = array<i32>} : memref<2x4xf32, #tpu.memory_space<vmem>>, vector<2x4xf32>,
      %cst_19 = arith.constant 0.000000e+00 : f32
      %18 = vector.broadcast %cst_19 : f32 to vector<2x4xf32>
      %c0_20 = arith.constant 0 : index
      %c0_21 = arith.constant 0 : index
      %19 = vector.load %arg21[%c0_20, %c0_21] : memref<2x4xf32, #tpu.memory_space<vmem>>, vector<2x4xf32>
      tpu.vector_store %arg21[%c0_20, %c0_21], %18 {strides = array<i32>} : memref<2x4xf32, #tpu.memory_space<vmem>>, vector<2x4xf32>,
    } else {
    }
    %c0 = arith.constant 0 : index
    %c0_1 = arith.constant 0 : index
    %3 = vector.load %arg20[%c0, %c0_1] : memref<2x4xf32, #tpu.memory_space<vmem>>, vector<2x4xf32>
    %c0_2 = arith.constant 0 : index
    %c0_3 = arith.constant 0 : index
    %c0_4 = arith.constant 0 : index
    %4 = vector.load %arg3[%c0_2, %c0_3, %c0_4] : memref<2x4x128xf32, #tpu.memory_space<vmem>>, vector<2x4x128xf32>
    %cst = arith.constant dense<0.000000e+00> : vector<2x4xf32>
    %5 = vector.multi_reduction <add>, %4, %cst [2] : vector<2x4x128xf32> to vector<2x4xf32>
    %6 = arith.addf %3, %5 : vector<2x4xf32>
    %c0_5 = arith.constant 0 : index
    %c0_6 = arith.constant 0 : index
    %7 = vector.load %arg20[%c0_5, %c0_6] : memref<2x4xf32, #tpu.memory_space<vmem>>, vector<2x4xf32>
    tpu.vector_store %arg20[%c0_5, %c0_6], %6 {strides = array<i32>} : memref<2x4xf32, #tpu.memory_space<vmem>>, vector<2x4xf32>,
    %c0_7 = arith.constant 0 : index
    %c0_8 = arith.constant 0 : index
    %8 = vector.load %arg21[%c0_7, %c0_8] : memref<2x4xf32, #tpu.memory_space<vmem>>, vector<2x4xf32>
    %c0_9 = arith.constant 0 : index
    %c0_10 = arith.constant 0 : index
    %c0_11 = arith.constant 0 : index
    %9 = vector.load %arg4[%c0_9, %c0_10, %c0_11] : memref<2x4x128xf32, #tpu.memory_space<vmem>>, vector<2x4x128xf32>
    %cst_12 = arith.constant dense<0.000000e+00> : vector<2x4xf32>
    %10 = vector.multi_reduction <add>, %9, %cst_12 [2] : vector<2x4x128xf32> to vector<2x4xf32>
    %11 = arith.addf %8, %10 : vector<2x4xf32>
    %c0_13 = arith.constant 0 : index
    %c0_14 = arith.constant 0 : index
    %12 = vector.load %arg21[%c0_13, %c0_14] : memref<2x4xf32, #tpu.memory_space<vmem>>, vector<2x4xf32>
    tpu.vector_store %arg21[%c0_13, %c0_14], %11 {strides = array<i32>} : memref<2x4xf32, #tpu.memory_space<vmem>>, vector<2x4xf32>,
    %c1_i32 = arith.constant 1 : i32
    %13 = arith.cmpi eq, %arg1, %c1_i32 : i32
    %14 = arith.extui %13 : i1 to i32
    %c0_i32_15 = arith.constant 0 : i32
    %15 = arith.cmpi ne, %14, %c0_i32_15 : i32
    scf.if %15 {
      %c0_16 = arith.constant 0 : index
      %c0_17 = arith.constant 0 : index
      %16 = vector.load %arg2[%c0_16, %c0_17] : memref<2x32xf32, #tpu.memory_space<vmem>>, vector<2x32xf32>
      %c0_18 = arith.constant 0 : index
      %c0_19 = arith.constant 0 : index
      %17 = vector.load %arg5[%c0_18, %c0_19] : memref<32x32xbf16, #tpu.memory_space<vmem>>, vector<32x32xbf16>
      %18 = arith.truncf %16 : vector<2x32xf32> to vector<2x32xbf16>
      %cst_20 = arith.constant dense<0.000000e+00> : vector<2x32xf32>
      %19 = tpu.matmul %18, %17, %cst_20 {dimension_numbers = #tpu.dot_dimension_numbers<[1], [0], [0], [1], [0, 0, 1, 1], [], []>} : vector<2x32xbf16>, vector<32x32xbf16>, vector<2x32xf32> -> vector<2x32xf32>
      %c0_21 = arith.constant 0 : index
      %c0_22 = arith.constant 0 : index
      %20 = vector.load %arg6[%c0_21, %c0_22] : memref<1x32xf32, #tpu.memory_space<vmem>>, vector<1x32xf32>
      %21 = vector.broadcast %20 : vector<1x32xf32> to vector<2x32xf32>
      %22 = arith.addf %19, %21 : vector<2x32xf32>
      %23 = math.tanh %22 : vector<2x32xf32>
      %c0_23 = arith.constant 0 : index
      %c0_24 = arith.constant 0 : index
      %24 = vector.load %arg9[%c0_23, %c0_24] : memref<32x32xbf16, #tpu.memory_space<vmem>>, vector<32x32xbf16>
      %25 = arith.truncf %23 : vector<2x32xf32> to vector<2x32xbf16>
      %cst_25 = arith.constant dense<0.000000e+00> : vector<2x32xf32>
      %26 = tpu.matmul %25, %24, %cst_25 {dimension_numbers = #tpu.dot_dimension_numbers<[1], [0], [0], [1], [0, 0, 1, 1], [], []>} : vector<2x32xbf16>, vector<32x32xbf16>, vector<2x32xf32> -> vector<2x32xf32>
      %c0_26 = arith.constant 0 : index
      %c0_27 = arith.constant 0 : index
      %27 = vector.load %arg10[%c0_26, %c0_27] : memref<1x32xf32, #tpu.memory_space<vmem>>, vector<1x32xf32>
      %28 = vector.broadcast %27 : vector<1x32xf32> to vector<2x32xf32>
      %29 = arith.addf %26, %28 : vector<2x32xf32>
      %c0_28 = arith.constant 0 : index
      %c0_29 = arith.constant 0 : index
      %30 = vector.load %arg20[%c0_28, %c0_29] : memref<2x4xf32, #tpu.memory_space<vmem>>, vector<2x4xf32>
      %c0_30 = arith.constant 0 : index
      %c0_31 = arith.constant 0 : index
      %31 = vector.load %arg7[%c0_30, %c0_31] : memref<4x16xbf16, #tpu.memory_space<vmem>>, vector<4x16xbf16>
      %32 = arith.truncf %30 : vector<2x4xf32> to vector<2x4xbf16>
      %cst_32 = arith.constant dense<0.000000e+00> : vector<2x16xf32>
      %33 = tpu.matmul %32, %31, %cst_32 {dimension_numbers = #tpu.dot_dimension_numbers<[1], [0], [0], [1], [0, 0, 1, 1], [], []>} : vector<2x4xbf16>, vector<4x16xbf16>, vector<2x16xf32> -> vector<2x16xf32>
      %c0_33 = arith.constant 0 : index
      %c0_34 = arith.constant 0 : index
      %34 = vector.load %arg21[%c0_33, %c0_34] : memref<2x4xf32, #tpu.memory_space<vmem>>, vector<2x4xf32>
      %c0_35 = arith.constant 0 : index
      %c0_36 = arith.constant 0 : index
      %35 = vector.load %arg8[%c0_35, %c0_36] : memref<4x16xbf16, #tpu.memory_space<vmem>>, vector<4x16xbf16>
      %36 = arith.truncf %34 : vector<2x4xf32> to vector<2x4xbf16>
      %cst_37 = arith.constant dense<0.000000e+00> : vector<2x16xf32>
      %37 = tpu.matmul %36, %35, %cst_37 {dimension_numbers = #tpu.dot_dimension_numbers<[1], [0], [0], [1], [0, 0, 1, 1], [], []>} : vector<2x4xbf16>, vector<4x16xbf16>, vector<2x16xf32> -> vector<2x16xf32>
      %c0_38 = arith.constant 0 : index
      %c0_39 = arith.constant 0 : index
      %38 = vector.load %arg11[%c0_38, %c0_39] : memref<32x32xbf16, #tpu.memory_space<vmem>>, vector<32x32xbf16>
      %39 = vector.extract_strided_slice %38 {offsets = [0, 0], sizes = [16, 32], strides = [1, 1]} : vector<32x32xbf16> to vector<16x32xbf16>
      %40 = arith.truncf %33 : vector<2x16xf32> to vector<2x16xbf16>
      %cst_40 = arith.constant dense<0.000000e+00> : vector<2x32xf32>
      %41 = tpu.matmul %40, %39, %cst_40 {dimension_numbers = #tpu.dot_dimension_numbers<[1], [0], [0], [1], [0, 0, 1, 1], [], []>} : vector<2x16xbf16>, vector<16x32xbf16>, vector<2x32xf32> -> vector<2x32xf32>
      %42 = vector.extract_strided_slice %38 {offsets = [16, 0], sizes = [16, 32], strides = [1, 1]} : vector<32x32xbf16> to vector<16x32xbf16>
      %43 = arith.truncf %37 : vector<2x16xf32> to vector<2x16xbf16>
      %cst_41 = arith.constant dense<0.000000e+00> : vector<2x32xf32>
      %44 = tpu.matmul %43, %42, %cst_41 {dimension_numbers = #tpu.dot_dimension_numbers<[1], [0], [0], [1], [0, 0, 1, 1], [], []>} : vector<2x16xbf16>, vector<16x32xbf16>, vector<2x32xf32> -> vector<2x32xf32>
      %45 = arith.addf %41, %44 : vector<2x32xf32>
      %c0_42 = arith.constant 0 : index
      %c0_43 = arith.constant 0 : index
      %46 = vector.load %arg12[%c0_42, %c0_43] : memref<1x32xf32, #tpu.memory_space<vmem>>, vector<1x32xf32>
      %47 = vector.broadcast %46 : vector<1x32xf32> to vector<2x32xf32>
      %48 = arith.addf %45, %47 : vector<2x32xf32>
      %49 = vector.shape_cast %29 : vector<2x32xf32> to vector<1x2x32xf32>
      %50 = vector.shape_cast %48 : vector<2x32xf32> to vector<1x2x32xf32>
      %51 = tpu.concatenate %49, %50 in 0 : vector<1x2x32xf32>, vector<1x2x32xf32> -> vector<2x2x32xf32>
      %c0_44 = arith.constant 0 : index
      %c0_45 = arith.constant 0 : index
      %c0_46 = arith.constant 0 : index
      %c0_47 = arith.constant 0 : index
      %52 = vector.load %arg13[%c0_44, %c0_45, %c0_46, %c0_47] : memref<2x2x32x32xbf16, #tpu.memory_space<vmem>>, vector<2x2x32x32xbf16>
      %c0_48 = arith.constant 0 : index
      %c0_49 = arith.constant 0 : index
      %c0_50 = arith.constant 0 : index
      %c0_51 = arith.constant 0 : index
      %53 = vector.load %arg14[%c0_48, %c0_49, %c0_50, %c0_51] : memref<2x2x1x32xf32, #tpu.memory_space<vmem>>, vector<2x2x1x32xf32>
      %c0_52 = arith.constant 0 : index
      %c0_53 = arith.constant 0 : index
      %c0_54 = arith.constant 0 : index
      %c0_55 = arith.constant 0 : index
      %54 = vector.load %arg15[%c0_52, %c0_53, %c0_54, %c0_55] : memref<2x2x1x32xf32, #tpu.memory_space<vmem>>, vector<2x2x1x32xf32>
      %c0_56 = arith.constant 0 : index
      %c0_57 = arith.constant 0 : index
      %c0_58 = arith.constant 0 : index
      %c0_59 = arith.constant 0 : index
      %55 = vector.load %arg16[%c0_56, %c0_57, %c0_58, %c0_59] : memref<2x2x1x32xf32, #tpu.memory_space<vmem>>, vector<2x2x1x32xf32>
      %cst_60 = arith.constant 5.000000e-01 : f32
      %56 = vector.broadcast %cst_60 : f32 to vector<2x2x32xf32>
      %57 = arith.mulf %56, %51 : vector<2x2x32xf32>
      %cst_61 = arith.constant 4.471500e-02 : f32
      %58 = vector.broadcast %cst_61 : f32 to vector<2x2x32xf32>
      %59 = arith.mulf %58, %51 : vector<2x2x32xf32>
      %60 = arith.mulf %59, %51 : vector<2x2x32xf32>
      %61 = arith.mulf %60, %51 : vector<2x2x32xf32>
      %62 = arith.addf %51, %61 : vector<2x2x32xf32>
      %cst_62 = arith.constant 0.797884583 : f32
      %63 = vector.broadcast %cst_62 : f32 to vector<2x2x32xf32>
      %64 = arith.mulf %63, %62 : vector<2x2x32xf32>
      %65 = math.tanh %64 : vector<2x2x32xf32>
      %cst_63 = arith.constant 1.000000e+00 : f32
      %66 = vector.broadcast %cst_63 : f32 to vector<2x2x32xf32>
      %67 = arith.addf %66, %65 : vector<2x2x32xf32>
      %68 = arith.mulf %57, %67 : vector<2x2x32xf32>
      %69 = vector.extract_strided_slice %52 {offsets = [0, 0, 0, 0], sizes = [1, 2, 32, 32], strides = [1, 1, 1, 1]} : vector<2x2x32x32xbf16> to vector<1x2x32x32xbf16>
      %70 = vector.shape_cast %69 : vector<1x2x32x32xbf16> to vector<2x32x32xbf16>
      %71 = arith.truncf %68 : vector<2x2x32xf32> to vector<2x2x32xbf16>
      "tpu.trace_start"() <{level = 10 : i32, message = "sbp,spq->sbq"}> : () -> ()
      %cst_64 = arith.constant dense<0.000000e+00> : vector<2x2x32xf32>
      %72 = tpu.matmul %71, %70, %cst_64 {dimension_numbers = #tpu.dot_dimension_numbers<[2], [1], [1], [2], [0, 0, 0, 1, 1, 2], [0], [0]>} : vector<2x2x32xbf16>, vector<2x32x32xbf16>, vector<2x2x32xf32> -> vector<2x2x32xf32>
      "tpu.trace_stop"() : () -> ()
      %73 = vector.extract_strided_slice %53 {offsets = [0, 0, 0, 0], sizes = [1, 2, 1, 32], strides = [1, 1, 1, 1]} : vector<2x2x1x32xf32> to vector<1x2x1x32xf32>
      %74 = vector.shape_cast %73 : vector<1x2x1x32xf32> to vector<2x1x32xf32>
      %75 = vector.broadcast %74 : vector<2x1x32xf32> to vector<2x2x32xf32>
      %76 = arith.addf %72, %75 : vector<2x2x32xf32>
      %77 = arith.addf %76, %51 : vector<2x2x32xf32>
      %78 = vector.extract_strided_slice %54 {offsets = [0, 0, 0, 0], sizes = [1, 2, 1, 32], strides = [1, 1, 1, 1]} : vector<2x2x1x32xf32> to vector<1x2x1x32xf32>
      %79 = vector.shape_cast %78 : vector<1x2x1x32xf32> to vector<2x1x32xf32>
      %80 = vector.extract_strided_slice %55 {offsets = [0, 0, 0, 0], sizes = [1, 2, 1, 32], strides = [1, 1, 1, 1]} : vector<2x2x1x32xf32> to vector<1x2x1x32xf32>
      %81 = vector.shape_cast %80 : vector<1x2x1x32xf32> to vector<2x1x32xf32>
      %cst_65 = arith.constant dense<0.000000e+00> : vector<2x2xf32>
      %82 = vector.multi_reduction <add>, %77, %cst_65 [2] : vector<2x2x32xf32> to vector<2x2xf32>
      %83 = vector.shape_cast %82 : vector<2x2xf32> to vector<2x2x1xf32>
      %cst_66 = arith.constant 3.200000e+01 : f32
      %84 = vector.broadcast %cst_66 : f32 to vector<2x2x1xf32>
      %85 = arith.divf %83, %84 : vector<2x2x1xf32>
      %86 = vector.broadcast %85 : vector<2x2x1xf32> to vector<2x2x32xf32>
      %87 = arith.subf %77, %86 : vector<2x2x32xf32>
      %88 = arith.mulf %87, %87 : vector<2x2x32xf32>
      %cst_67 = arith.constant dense<0.000000e+00> : vector<2x2xf32>
      %89 = vector.multi_reduction <add>, %88, %cst_67 [2] : vector<2x2x32xf32> to vector<2x2xf32>
      %90 = vector.shape_cast %89 : vector<2x2xf32> to vector<2x2x1xf32>
      %cst_68 = arith.constant 3.200000e+01 : f32
      %91 = vector.broadcast %cst_68 : f32 to vector<2x2x1xf32>
      %92 = arith.divf %90, %91 : vector<2x2x1xf32>
      %93 = vector.broadcast %85 : vector<2x2x1xf32> to vector<2x2x32xf32>
      %94 = arith.subf %77, %93 : vector<2x2x32xf32>
      %cst_69 = arith.constant 9.99999974E-6 : f32
      %95 = vector.broadcast %cst_69 : f32 to vector<2x2x1xf32>
      %96 = arith.addf %92, %95 : vector<2x2x1xf32>
      %97 = math.rsqrt %96 : vector<2x2x1xf32>
      %98 = vector.broadcast %97 : vector<2x2x1xf32> to vector<2x2x32xf32>
      %99 = arith.mulf %94, %98 : vector<2x2x32xf32>
      %100 = vector.broadcast %79 : vector<2x1x32xf32> to vector<2x2x32xf32>
      %101 = arith.mulf %99, %100 : vector<2x2x32xf32>
      %102 = vector.broadcast %81 : vector<2x1x32xf32> to vector<2x2x32xf32>
      %103 = arith.addf %101, %102 : vector<2x2x32xf32>
      %cst_70 = arith.constant 5.000000e-01 : f32
      %104 = vector.broadcast %cst_70 : f32 to vector<2x2x32xf32>
      %105 = arith.mulf %104, %103 : vector<2x2x32xf32>
      %cst_71 = arith.constant 4.471500e-02 : f32
      %106 = vector.broadcast %cst_71 : f32 to vector<2x2x32xf32>
      %107 = arith.mulf %106, %103 : vector<2x2x32xf32>
      %108 = arith.mulf %107, %103 : vector<2x2x32xf32>
      %109 = arith.mulf %108, %103 : vector<2x2x32xf32>
      %110 = arith.addf %103, %109 : vector<2x2x32xf32>
      %cst_72 = arith.constant 0.797884583 : f32
      %111 = vector.broadcast %cst_72 : f32 to vector<2x2x32xf32>
      %112 = arith.mulf %111, %110 : vector<2x2x32xf32>
      %113 = math.tanh %112 : vector<2x2x32xf32>
      %cst_73 = arith.constant 1.000000e+00 : f32
      %114 = vector.broadcast %cst_73 : f32 to vector<2x2x32xf32>
      %115 = arith.addf %114, %113 : vector<2x2x32xf32>
      %116 = arith.mulf %105, %115 : vector<2x2x32xf32>
      %117 = vector.extract_strided_slice %52 {offsets = [1, 0, 0, 0], sizes = [1, 2, 32, 32], strides = [1, 1, 1, 1]} : vector<2x2x32x32xbf16> to vector<1x2x32x32xbf16>
      %118 = vector.shape_cast %117 : vector<1x2x32x32xbf16> to vector<2x32x32xbf16>
      %119 = arith.truncf %116 : vector<2x2x32xf32> to vector<2x2x32xbf16>
      "tpu.trace_start"() <{level = 10 : i32, message = "sbp,spq->sbq"}> : () -> ()
      %cst_74 = arith.constant dense<0.000000e+00> : vector<2x2x32xf32>
      %120 = tpu.matmul %119, %118, %cst_74 {dimension_numbers = #tpu.dot_dimension_numbers<[2], [1], [1], [2], [0, 0, 0, 1, 1, 2], [0], [0]>} : vector<2x2x32xbf16>, vector<2x32x32xbf16>, vector<2x2x32xf32> -> vector<2x2x32xf32>
      "tpu.trace_stop"() : () -> ()
      %121 = vector.extract_strided_slice %53 {offsets = [1, 0, 0, 0], sizes = [1, 2, 1, 32], strides = [1, 1, 1, 1]} : vector<2x2x1x32xf32> to vector<1x2x1x32xf32>
      %122 = vector.shape_cast %121 : vector<1x2x1x32xf32> to vector<2x1x32xf32>
      %123 = vector.broadcast %122 : vector<2x1x32xf32> to vector<2x2x32xf32>
      %124 = arith.addf %120, %123 : vector<2x2x32xf32>
      %125 = arith.addf %124, %103 : vector<2x2x32xf32>
      %126 = vector.extract_strided_slice %54 {offsets = [1, 0, 0, 0], sizes = [1, 2, 1, 32], strides = [1, 1, 1, 1]} : vector<2x2x1x32xf32> to vector<1x2x1x32xf32>
      %127 = vector.shape_cast %126 : vector<1x2x1x32xf32> to vector<2x1x32xf32>
      %128 = vector.extract_strided_slice %55 {offsets = [1, 0, 0, 0], sizes = [1, 2, 1, 32], strides = [1, 1, 1, 1]} : vector<2x2x1x32xf32> to vector<1x2x1x32xf32>
      %129 = vector.shape_cast %128 : vector<1x2x1x32xf32> to vector<2x1x32xf32>
      %cst_75 = arith.constant dense<0.000000e+00> : vector<2x2xf32>
      %130 = vector.multi_reduction <add>, %125, %cst_75 [2] : vector<2x2x32xf32> to vector<2x2xf32>
      %131 = vector.shape_cast %130 : vector<2x2xf32> to vector<2x2x1xf32>
      %cst_76 = arith.constant 3.200000e+01 : f32
      %132 = vector.broadcast %cst_76 : f32 to vector<2x2x1xf32>
      %133 = arith.divf %131, %132 : vector<2x2x1xf32>
      %134 = vector.broadcast %133 : vector<2x2x1xf32> to vector<2x2x32xf32>
      %135 = arith.subf %125, %134 : vector<2x2x32xf32>
      %136 = arith.mulf %135, %135 : vector<2x2x32xf32>
      %cst_77 = arith.constant dense<0.000000e+00> : vector<2x2xf32>
      %137 = vector.multi_reduction <add>, %136, %cst_77 [2] : vector<2x2x32xf32> to vector<2x2xf32>
      %138 = vector.shape_cast %137 : vector<2x2xf32> to vector<2x2x1xf32>
      %cst_78 = arith.constant 3.200000e+01 : f32
      %139 = vector.broadcast %cst_78 : f32 to vector<2x2x1xf32>
      %140 = arith.divf %138, %139 : vector<2x2x1xf32>
      %141 = vector.broadcast %133 : vector<2x2x1xf32> to vector<2x2x32xf32>
      %142 = arith.subf %125, %141 : vector<2x2x32xf32>
      %cst_79 = arith.constant 9.99999974E-6 : f32
      %143 = vector.broadcast %cst_79 : f32 to vector<2x2x1xf32>
      %144 = arith.addf %140, %143 : vector<2x2x1xf32>
      %145 = math.rsqrt %144 : vector<2x2x1xf32>
      %146 = vector.broadcast %145 : vector<2x2x1xf32> to vector<2x2x32xf32>
      %147 = arith.mulf %142, %146 : vector<2x2x32xf32>
      %148 = vector.broadcast %127 : vector<2x1x32xf32> to vector<2x2x32xf32>
      %149 = arith.mulf %147, %148 : vector<2x2x32xf32>
      %150 = vector.broadcast %129 : vector<2x1x32xf32> to vector<2x2x32xf32>
      %151 = arith.addf %149, %150 : vector<2x2x32xf32>
      %c0_80 = arith.constant 0 : index
      %c0_81 = arith.constant 0 : index
      %152 = vector.load %arg17[%c0_80, %c0_81] : memref<64x128xbf16, #tpu.memory_space<vmem>>, vector<64x128xbf16>
      %153 = vector.extract_strided_slice %151 {offsets = [0, 0, 0], sizes = [1, 2, 32], strides = [1, 1, 1]} : vector<2x2x32xf32> to vector<1x2x32xf32>
      %154 = vector.shape_cast %153 : vector<1x2x32xf32> to vector<2x32xf32>
      %155 = vector.extract_strided_slice %152 {offsets = [0, 0], sizes = [32, 128], strides = [1, 1]} : vector<64x128xbf16> to vector<32x128xbf16>
      %156 = arith.truncf %154 : vector<2x32xf32> to vector<2x32xbf16>
      %cst_82 = arith.constant dense<0.000000e+00> : vector<2x128xf32>
      %157 = tpu.matmul %156, %155, %cst_82 {dimension_numbers = #tpu.dot_dimension_numbers<[1], [0], [0], [1], [0, 0, 1, 1], [], []>} : vector<2x32xbf16>, vector<32x128xbf16>, vector<2x128xf32> -> vector<2x128xf32>
      %158 = vector.extract_strided_slice %151 {offsets = [1, 0, 0], sizes = [1, 2, 32], strides = [1, 1, 1]} : vector<2x2x32xf32> to vector<1x2x32xf32>
      %159 = vector.shape_cast %158 : vector<1x2x32xf32> to vector<2x32xf32>
      %160 = vector.extract_strided_slice %152 {offsets = [32, 0], sizes = [32, 128], strides = [1, 1]} : vector<64x128xbf16> to vector<32x128xbf16>
      %161 = arith.truncf %159 : vector<2x32xf32> to vector<2x32xbf16>
      %cst_83 = arith.constant dense<0.000000e+00> : vector<2x128xf32>
      %162 = tpu.matmul %161, %160, %cst_83 {dimension_numbers = #tpu.dot_dimension_numbers<[1], [0], [0], [1], [0, 0, 1, 1], [], []>} : vector<2x32xbf16>, vector<32x128xbf16>, vector<2x128xf32> -> vector<2x128xf32>
      %163 = arith.addf %157, %162 : vector<2x128xf32>
      %c0_84 = arith.constant 0 : index
      %c0_85 = arith.constant 0 : index
      %164 = vector.load %arg18[%c0_84, %c0_85] : memref<1x128xf32, #tpu.memory_space<vmem>>, vector<1x128xf32>
      %165 = vector.broadcast %164 : vector<1x128xf32> to vector<2x128xf32>
      %166 = arith.addf %163, %165 : vector<2x128xf32>
      %c0_86 = arith.constant 0 : index
      %c0_87 = arith.constant 0 : index
      %167 = vector.load %arg19[%c0_86, %c0_87] : memref<2x128xf32, #tpu.memory_space<vmem>>, vector<2x128xf32>
      tpu.vector_store %arg19[%c0_86, %c0_87], %166 {strides = array<i32>} : memref<2x128xf32, #tpu.memory_space<vmem>>, vector<2x128xf32>,
    } else {
    }
    return
  }
  func.func @transform_0(%arg0: i32, %arg1: i32) -> (i32, i32) {
    %c0_i32 = arith.constant 0 : i32
    %c0_i32_0 = arith.constant 0 : i32
    return %arg0, %c0_i32 : i32, i32
  }
  func.func @transform_1(%arg0: i32, %arg1: i32) -> (i32, i32, i32) {
    %c0_i32 = arith.constant 0 : i32
    %c0_i32_0 = arith.constant 0 : i32
    return %arg0, %c0_i32, %arg1 : i32, i32, i32
  }
  func.func @transform_2(%arg0: i32, %arg1: i32) -> (i32, i32, i32) {
    %c0_i32 = arith.constant 0 : i32
    %c0_i32_0 = arith.constant 0 : i32
    return %arg0, %c0_i32, %arg1 : i32, i32, i32
  }
  func.func @transform_3(%arg0: i32, %arg1: i32) -> (i32, i32) {
    %c0_i32 = arith.constant 0 : i32
    %c0_i32_0 = arith.constant 0 : i32
    %c0_i32_1 = arith.constant 0 : i32
    return %c0_i32, %c0_i32_0 : i32, i32
  }
  func.func @transform_4(%arg0: i32, %arg1: i32) -> (i32, i32) {
    %c0_i32 = arith.constant 0 : i32
    %c0_i32_0 = arith.constant 0 : i32
    %c0_i32_1 = arith.constant 0 : i32
    return %c0_i32, %c0_i32_0 : i32, i32
  }
  func.func @transform_5(%arg0: i32, %arg1: i32) -> (i32, i32) {
    %c0_i32 = arith.constant 0 : i32
    %c0_i32_0 = arith.constant 0 : i32
    %c0_i32_1 = arith.constant 0 : i32
    return %c0_i32, %c0_i32_0 : i32, i32
  }
  func.func @transform_6(%arg0: i32, %arg1: i32) -> (i32, i32) {
    %c0_i32 = arith.constant 0 : i32
    %c0_i32_0 = arith.constant 0 : i32
    %c0_i32_1 = arith.constant 0 : i32
    return %c0_i32, %c0_i32_0 : i32, i32
  }
  func.func @transform_7(%arg0: i32, %arg1: i32) -> (i32, i32) {
    %c0_i32 = arith.constant 0 : i32
    %c0_i32_0 = arith.constant 0 : i32
    %c0_i32_1 = arith.constant 0 : i32
    return %c0_i32, %c0_i32_0 : i32, i32
  }
  func.func @transform_8(%arg0: i32, %arg1: i32) -> (i32, i32) {
    %c0_i32 = arith.constant 0 : i32
    %c0_i32_0 = arith.constant 0 : i32
    %c0_i32_1 = arith.constant 0 : i32
    return %c0_i32, %c0_i32_0 : i32, i32
  }
  func.func @transform_9(%arg0: i32, %arg1: i32) -> (i32, i32) {
    %c0_i32 = arith.constant 0 : i32
    %c0_i32_0 = arith.constant 0 : i32
    %c0_i32_1 = arith.constant 0 : i32
    return %c0_i32, %c0_i32_0 : i32, i32
  }
  func.func @transform_10(%arg0: i32, %arg1: i32) -> (i32, i32) {
    %c0_i32 = arith.constant 0 : i32
    %c0_i32_0 = arith.constant 0 : i32
    %c0_i32_1 = arith.constant 0 : i32
    return %c0_i32, %c0_i32_0 : i32, i32
  }
  func.func @transform_11(%arg0: i32, %arg1: i32) -> (i32, i32, i32, i32) {
    %c0_i32 = arith.constant 0 : i32
    %c0_i32_0 = arith.constant 0 : i32
    %c0_i32_1 = arith.constant 0 : i32
    %c0_i32_2 = arith.constant 0 : i32
    %c0_i32_3 = arith.constant 0 : i32
    return %c0_i32, %c0_i32_0, %c0_i32_1, %c0_i32_2 : i32, i32, i32, i32
  }
  func.func @transform_12(%arg0: i32, %arg1: i32) -> (i32, i32, i32, i32) {
    %c0_i32 = arith.constant 0 : i32
    %c0_i32_0 = arith.constant 0 : i32
    %c0_i32_1 = arith.constant 0 : i32
    %c0_i32_2 = arith.constant 0 : i32
    %c0_i32_3 = arith.constant 0 : i32
    return %c0_i32, %c0_i32_0, %c0_i32_1, %c0_i32_2 : i32, i32, i32, i32
  }
  func.func @transform_13(%arg0: i32, %arg1: i32) -> (i32, i32, i32, i32) {
    %c0_i32 = arith.constant 0 : i32
    %c0_i32_0 = arith.constant 0 : i32
    %c0_i32_1 = arith.constant 0 : i32
    %c0_i32_2 = arith.constant 0 : i32
    %c0_i32_3 = arith.constant 0 : i32
    return %c0_i32, %c0_i32_0, %c0_i32_1, %c0_i32_2 : i32, i32, i32, i32
  }
  func.func @transform_14(%arg0: i32, %arg1: i32) -> (i32, i32, i32, i32) {
    %c0_i32 = arith.constant 0 : i32
    %c0_i32_0 = arith.constant 0 : i32
    %c0_i32_1 = arith.constant 0 : i32
    %c0_i32_2 = arith.constant 0 : i32
    %c0_i32_3 = arith.constant 0 : i32
    return %c0_i32, %c0_i32_0, %c0_i32_1, %c0_i32_2 : i32, i32, i32, i32
  }
  func.func @transform_15(%arg0: i32, %arg1: i32) -> (i32, i32) {
    %c0_i32 = arith.constant 0 : i32
    %c0_i32_0 = arith.constant 0 : i32
    %c0_i32_1 = arith.constant 0 : i32
    return %c0_i32, %c0_i32_0 : i32, i32
  }
  func.func @transform_16(%arg0: i32, %arg1: i32) -> (i32, i32) {
    %c0_i32 = arith.constant 0 : i32
    %c0_i32_0 = arith.constant 0 : i32
    %c0_i32_1 = arith.constant 0 : i32
    return %c0_i32, %c0_i32_0 : i32, i32
  }
  func.func @transform_17(%arg0: i32, %arg1: i32) -> (i32, i32) {
    %c0_i32 = arith.constant 0 : i32
    %c0_i32_0 = arith.constant 0 : i32
    return %arg0, %c0_i32 : i32, i32
  }
}

</mosaic_0001>

<llo_original>
// kernel: tpu_custom_call.1
$region0: #{tpu_custom_call.1}
  #allocation0 [shape = 'u32[]', space=smem, size = 0x4, offset = 0x4, fixed_abs, tag = 'smem constant byte address 0x4 - core index']
  #allocation1 [shape = 'u32[144,128]{1,0:T(1,128)}', space=vmem, size = 0x12000, scoped, tag = 'internal scratch']
  #allocation2 [shape = 'f32[2,4]{1,0:T(2,128)}', space=vmem, size = 0x400, scoped, tag = 'scratch operand']
  #allocation3 [shape = 'f32[2,4]{1,0:T(2,128)}', space=vmem, size = 0x400, scoped, tag = 'scratch operand']
  %s0 = inlined_call_operand.hbm [shape: f32[2,32], index: 0, kind: input, shape index: {}]
  %s1 = inlined_call_operand.hbm [shape: f32[2,4,256], index: 1, kind: input, shape index: {}]
  %s2 = inlined_call_operand.hbm [shape: f32[2,4,256], index: 2, kind: input, shape index: {}]
  %s3 = inlined_call_operand.hbm [shape: bf16[32,32], index: 3, kind: input, shape index: {}]
  %s4 = inlined_call_operand.hbm [shape: f32[1,32], index: 4, kind: input, shape index: {}]
  %s5 = inlined_call_operand.hbm [shape: bf16[4,16], index: 5, kind: input, shape index: {}]
  %s6 = inlined_call_operand.hbm [shape: bf16[4,16], index: 6, kind: input, shape index: {}]
  %s7 = inlined_call_operand.vmem [shape: bf16[32,32], index: 7, kind: input, shape index: {}]
  %s8 = inlined_call_operand.hbm [shape: f32[1,32], index: 8, kind: input, shape index: {}]
  %s9 = inlined_call_operand.hbm [shape: bf16[32,32], index: 9, kind: input, shape index: {}]
  %s10 = inlined_call_operand.hbm [shape: f32[1,32], index: 10, kind: input, shape index: {}]
  %s11 = inlined_call_operand.hbm [shape: bf16[2,2,32,32], index: 11, kind: input, shape index: {}]
  %s12 = inlined_call_operand.vmem [shape: f32[2,2,1,32], index: 12, kind: input, shape index: {}]
  %s13 = inlined_call_operand.vmem [shape: f32[2,2,1,32], index: 13, kind: input, shape index: {}]
  %s14 = inlined_call_operand.hbm [shape: f32[2,2,1,32], index: 14, kind: input, shape index: {}]
  %s15 = inlined_call_operand.vmem [shape: bf16[64,128], index: 15, kind: input, shape index: {}]
  %s16 = inlined_call_operand.vmem [shape: f32[1,128], index: 16, kind: input, shape index: {}]
  %s17 = inlined_call_operand.hbm [shape: f32[2,128], index: 17, kind: output, shape index: {}]
  %s18 = sld [smem:[#allocation0]]
  $region157: #{tpu_custom_call.1} parent=0
    _
  %s20 = ssub.s32 1, %s18
  %s21 = scalar_select 0, %s20, %s18
  $region1: #{tpu_custom_call.1} parent=0
    #allocation4 [shape = 'u8[1024]{0}', space=vmem, size = 0x400, scoped, tag = 'input window, operand 0, single buffered']
    #allocation5 [shape = 's32[2]{0}', space=sflag, size = 0x8, scoped, tag = 'scoped memory for tpu_custom_call.1']
    #allocation6 [shape = 's32[2]{0}', space=sflag, size = 0x8, scoped, tag = 'scoped memory for tpu_custom_call.1']
    #allocation7 [shape = 'u8[8192]{0}', space=vmem, size = 0x2000, scoped, tag = 'input window, operand 1']
    #allocation8 [shape = 's32[2]{0}', space=sflag, size = 0x8, scoped, tag = 'scoped memory for tpu_custom_call.1']
    #allocation9 [shape = 'u8[8192]{0}', space=vmem, size = 0x2000, scoped, tag = 'input window, operand 2']
    #allocation10 [shape = 'u8[8192]{0}', space=vmem, size = 0x2000, scoped, tag = 'input window, operand 3, single buffered']
    #allocation11 [shape = 's32[1]{0}', space=sflag, size = 0x4, scoped, tag = 'scoped memory for tpu_custom_call.1']
    #allocation12 [shape = 'u8[512]{0}', space=vmem, size = 0x400, scoped, tag = 'input window, operand 4, single buffered']
    #allocation13 [shape = 'u8[1024]{0}', space=vmem, size = 0x400, scoped, tag = 'input window, operand 5, single buffered']
    #allocation14 [shape = 's32[1]{0}', space=sflag, size = 0x4, scoped, tag = 'scoped memory for tpu_custom_call.1']
    #allocation15 [shape = 'u8[1024]{0}', space=vmem, size = 0x400, scoped, tag = 'input window, operand 6, single buffered']
    #allocation16 [shape = 'u8[512]{0}', space=vmem, size = 0x400, scoped, tag = 'input window, operand 8, single buffered']
    #allocation17 [shape = 's32[1]{0}', space=sflag, size = 0x4, scoped, tag = 'scoped memory for tpu_custom_call.1']
    #allocation18 [shape = 'u8[8192]{0}', space=vmem, size = 0x2000, scoped, tag = 'input window, operand 9, single buffered']
    #allocation19 [shape = 'u8[512]{0}', space=vmem, size = 0x400, scoped, tag = 'input window, operand 10, single buffered']
    #allocation20 [shape = 's32[1]{0}', space=sflag, size = 0x4, scoped, tag = 'scoped memory for tpu_custom_call.1']
    #allocation21 [shape = 'u8[32768]{0}', space=vmem, size = 0x8000, scoped, tag = 'input window, operand 11, single buffered']
    #allocation22 [shape = 'u8[2048]{0}', space=vmem, size = 0x800, scoped, tag = 'input window, operand 14, single buffered']
    #allocation23 [shape = 's32[1]{0}', space=sflag, size = 0x4, scoped, tag = 'scoped memory for tpu_custom_call.1']
    #allocation24 [shape = 'u8[1024]{0}', space=vmem, size = 0x400, scoped, tag = 'output window, operand 0, single buffered']
    %22 = vsyncpa [#allocation5], 0
    %23 = vsyncpa [#allocation8], 0
    %s24 = scalar_lea.sflag [#allocation8], 1
    %25 = vsyncpa %s24, 0
    %26 = vsyncpa [#allocation11], 0
    %27 = vsyncpa [#allocation14], 0
    %28 = vsyncpa [#allocation17], 0
    %29 = vsyncpa [#allocation20], 0
    %30 = vsyncpa [#allocation23], 0
    %31 = vsyncpa [#allocation6], 0
    loop: start=0, step=1, limit=4
    $region2: #{tpu_custom_call.1} parent=1 // loop_pre_header
      _
    $region3: #{tpu_custom_call.1} parent=1 // loop_header
      %s33 = sphi 0, %s37
      %p34 = scmp.ge.s32.totalorder %s33, 4
      %s40 = sphi 0, %s52
      %s41 = sphi 0, %s48
      %s42 = sphi 0, %s40
      %s43 = sphi 0, %s41
      %s44 = sphi 0, %s42
      %s45 = sphi 0, %s43
      %s55 = sphi 0, %s57
      %s58 = sphi 0, %s55
      %s59 = sphi 0, %s58
      %s75 = sphi 0, %s59
      %s83 = sphi 0, %s85
      %s86 = sphi 0, %s83
      %s87 = sphi 0, %s86
      %s103 = sphi 0, %s87
      %s111 = sphi 0, %s113
      %s114 = sphi 0, %s111
      %s115 = sphi 0, %s114
      %s131 = sphi 0, %s115
      %s135 = sphi 0, %s135
      %s137 = sphi 0, %s135
      %s138 = sphi 0, %s137
      %s152 = sphi 0, %s138
      %s156 = sphi 0, %s156
      %s158 = sphi 0, %s156
      %s159 = sphi 0, %s158
      %s173 = sphi 0, %s159
      %s177 = sphi 0, %s177
      %s179 = sphi 0, %s177
      %s180 = sphi 0, %s179
      %s194 = sphi 0, %s180
      %s198 = sphi 0, %s198
      %s200 = sphi 0, %s198
      %s201 = sphi 0, %s200
      %s215 = sphi 0, %s201
      %s219 = sphi 0, %s219
      %s221 = sphi 0, %s219
      %s222 = sphi 0, %s221
      %s236 = sphi 0, %s222
      %s240 = sphi 0, %s240
      %s242 = sphi 0, %s240
      %s243 = sphi 0, %s242
      %s257 = sphi 0, %s243
      %s261 = sphi 0, %s261
      %s263 = sphi 0, %s261
      %s264 = sphi 0, %s263
      %s278 = sphi 0, %s264
      %s282 = sphi 0, %s282
      %s284 = sphi 0, %s282
      %s285 = sphi 0, %s284
      %s299 = sphi 0, %s285
      %s303 = sphi 0, %s303
      %s305 = sphi 0, %s303
      %s306 = sphi 0, %s305
      %s320 = sphi 0, %s306
      %s324 = sphi 0, %s324
      %s326 = sphi 0, %s324
      %s327 = sphi 0, %s326
      %s341 = sphi 0, %s327
      %s345 = sphi 0, %s345
      %s347 = sphi 0, %s345
      %s348 = sphi 0, %s347
      %s362 = sphi 0, %s348
      %s366 = sphi 0, %s366
      %s368 = sphi 0, %s366
      %s369 = sphi 0, %s368
      %s383 = sphi 0, %s369
      %s387 = sphi 0, %s387
      %s389 = sphi 0, %s387
      %s390 = sphi 0, %s389
      %s404 = sphi 0, %s390
      %s408 = sphi 0, %s408
      %s410 = sphi 0, %s408
      %s411 = sphi 0, %s410
      %s425 = sphi 0, %s411
      %s431 = sphi 0, %s433
      %s434 = sphi 0, %s431
      %s435 = sphi 0, %s434
      %s451 = sphi 0, %s435
    $region4: #{tpu_custom_call.1} parent=1 // loop_header_branch
      %36 = sbr.rel (%p34) target = $region8
    $region5: #{tpu_custom_call.1} parent=1 // loop_body
      %s38 = ssub.s32 %s33, 1
      %s39 = ssub.s32 %s33, 2
      %s46 = sadd.s32 1, %s41
      %p47 = scmp.ge.s32.totalorder %s46, 2
      %s48 = scalar_select %p47, 0, %s46
      %s49 = sadd.s32 1, %s40
      %s50 = scalar_select %p47, %s49, %s40
      %p51 = scmp.ge.s32.totalorder %s50, 1
      %s52 = scalar_select %p51, 0, %s50
      %s53 = ssub.s32 %s40, %s52
      %p54 = scmp.eq.s32.totalorder %s53, 0
      %s56 = sadd.s32 %s55, 1
      %s57 = scalar_select %p54, %s55, %s56
      %p60 = pneg %p54
      %p61 = scmp.eq.s32.totalorder %s33, 1
      %p62 = por %p60, %p61
      %p63 = scmp.ne.s32.totalorder %s55, %s58
      %p64 = scmp.eq.s32.totalorder %s33, 0
      %p65 = por %p63, %p64
      %p66 = scmp.ne.s32.totalorder %s55, %s58
      %p67 = scmp.eq.s32.totalorder %s38, 1
      %p68 = por %p66, %p67
      %p69 = scmp.ne.s32.totalorder %s58, %s59
      %p70 = scmp.eq.s32.totalorder %s38, 0
      %p71 = por %p69, %p70
      %p72 = scmp.ne.s32.totalorder %s58, %s59
      %p73 = scmp.eq.s32.totalorder %s39, 1
      %p74 = por %p72, %p73
      %p76 = scmp.ne.s32.totalorder %s59, %s75
      %p77 = scmp.eq.s32.totalorder %s39, 0
      %p78 = por %p76, %p77
      %s79 = ssub.s32 %s40, %s52
      %s80 = ssub.s32 %s41, %s48
      %s81 = sor.u32 %s79, %s80
      %p82 = scmp.eq.s32.totalorder %s81, 0
      %s84 = sadd.s32 %s83, 1
      %s85 = scalar_select %p82, %s83, %s84
      %p88 = pneg %p82
      %p89 = scmp.eq.s32.totalorder %s33, 1
      %p90 = por %p88, %p89
      %p91 = scmp.ne.s32.totalorder %s83, %s86
      %p92 = scmp.eq.s32.totalorder %s33, 0
      %p93 = por %p91, %p92
      %p94 = scmp.ne.s32.totalorder %s83, %s86
      %p95 = scmp.eq.s32.totalorder %s38, 1
      %p96 = por %p94, %p95
      %p97 = scmp.ne.s32.totalorder %s86, %s87
      %p98 = scmp.eq.s32.totalorder %s38, 0
      %p99 = por %p97, %p98
      %p100 = scmp.ne.s32.totalorder %s86, %s87
      %p101 = scmp.eq.s32.totalorder %s39, 1
      %p102 = por %p100, %p101
      %p104 = scmp.ne.s32.totalorder %s87, %s103
      %p105 = scmp.eq.s32.totalorder %s39, 0
      %p106 = por %p104, %p105
      %s107 = ssub.s32 %s40, %s52
      %s108 = ssub.s32 %s41, %s48
      %s109 = sor.u32 %s107, %s108
      %p110 = scmp.eq.s32.totalorder %s109, 0
      %s112 = sadd.s32 %s111, 1
      %s113 = scalar_select %p110, %s111, %s112
      %p116 = pneg %p110
      %p117 = scmp.eq.s32.totalorder %s33, 1
      %p118 = por %p116, %p117
      %p119 = scmp.ne.s32.totalorder %s111, %s114
      %p120 = scmp.eq.s32.totalorder %s33, 0
      %p121 = por %p119, %p120
      %p122 = scmp.ne.s32.totalorder %s111, %s114
      %p123 = scmp.eq.s32.totalorder %s38, 1
      %p124 = por %p122, %p123
      %p125 = scmp.ne.s32.totalorder %s114, %s115
      %p126 = scmp.eq.s32.totalorder %s38, 0
      %p127 = por %p125, %p126
      %p128 = scmp.ne.s32.totalorder %s114, %s115
      %p129 = scmp.eq.s32.totalorder %s39, 1
      %p130 = por %p128, %p129
      %p132 = scmp.ne.s32.totalorder %s115, %s131
      %p133 = scmp.eq.s32.totalorder %s39, 0
      %p134 = por %p132, %p133
      %s136 = sadd.s32 %s135, 1
      %p139 = scmp.eq.s32.totalorder %s33, 1
      %p140 = scmp.ne.s32.totalorder %s135, %s137
      %p141 = scmp.eq.s32.totalorder %s33, 0
      %p142 = por %p140, %p141
      %p143 = scmp.ne.s32.totalorder %s135, %s137
      %p144 = scmp.eq.s32.totalorder %s38, 1
      %p145 = por %p143, %p144
      %p146 = scmp.ne.s32.totalorder %s137, %s138
      %p147 = scmp.eq.s32.totalorder %s38, 0
      %p148 = por %p146, %p147
      %p149 = scmp.ne.s32.totalorder %s137, %s138
      %p150 = scmp.eq.s32.totalorder %s39, 1
      %p151 = por %p149, %p150
      %p153 = scmp.ne.s32.totalorder %s138, %s152
      %p154 = scmp.eq.s32.totalorder %s39, 0
      %p155 = por %p153, %p154
      %s157 = sadd.s32 %s156, 1
      %p160 = scmp.eq.s32.totalorder %s33, 1
      %p161 = scmp.ne.s32.totalorder %s156, %s158
      %p162 = scmp.eq.s32.totalorder %s33, 0
      %p163 = por %p161, %p162
      %p164 = scmp.ne.s32.totalorder %s156, %s158
      %p165 = scmp.eq.s32.totalorder %s38, 1
      %p166 = por %p164, %p165
      %p167 = scmp.ne.s32.totalorder %s158, %s159
      %p168 = scmp.eq.s32.totalorder %s38, 0
      %p169 = por %p167, %p168
      %p170 = scmp.ne.s32.totalorder %s158, %s159
      %p171 = scmp.eq.s32.totalorder %s39, 1
      %p172 = por %p170, %p171
      %p174 = scmp.ne.s32.totalorder %s159, %s173
      %p175 = scmp.eq.s32.totalorder %s39, 0
      %p176 = por %p174, %p175
      %s178 = sadd.s32 %s177, 1
      %p181 = scmp.eq.s32.totalorder %s33, 1
      %p182 = scmp.ne.s32.totalorder %s177, %s179
      %p183 = scmp.eq.s32.totalorder %s33, 0
      %p184 = por %p182, %p183
      %p185 = scmp.ne.s32.totalorder %s177, %s179
      %p186 = scmp.eq.s32.totalorder %s38, 1
      %p187 = por %p185, %p186
      %p188 = scmp.ne.s32.totalorder %s179, %s180
      %p189 = scmp.eq.s32.totalorder %s38, 0
      %p190 = por %p188, %p189
      %p191 = scmp.ne.s32.totalorder %s179, %s180
      %p192 = scmp.eq.s32.totalorder %s39, 1
      %p193 = por %p191, %p192
      %p195 = scmp.ne.s32.totalorder %s180, %s194
      %p196 = scmp.eq.s32.totalorder %s39, 0
      %p197 = por %p195, %p196
      %s199 = sadd.s32 %s198, 1
      %p202 = scmp.eq.s32.totalorder %s33, 1
      %p203 = scmp.ne.s32.totalorder %s198, %s200
      %p204 = scmp.eq.s32.totalorder %s33, 0
      %p205 = por %p203, %p204
      %p206 = scmp.ne.s32.totalorder %s198, %s200
      %p207 = scmp.eq.s32.totalorder %s38, 1
      %p208 = por %p206, %p207
      %p209 = scmp.ne.s32.totalorder %s200, %s201
      %p210 = scmp.eq.s32.totalorder %s38, 0
      %p211 = por %p209, %p210
      %p212 = scmp.ne.s32.totalorder %s200, %s201
      %p213 = scmp.eq.s32.totalorder %s39, 1
      %p214 = por %p212, %p213
      %p216 = scmp.ne.s32.totalorder %s201, %s215
      %p217 = scmp.eq.s32.totalorder %s39, 0
      %p218 = por %p216, %p217
      %s220 = sadd.s32 %s219, 1
      %p223 = scmp.eq.s32.totalorder %s33, 1
      %p224 = scmp.ne.s32.totalorder %s219, %s221
      %p225 = scmp.eq.s32.totalorder %s33, 0
      %p226 = por %p224, %p225
      %p227 = scmp.ne.s32.totalorder %s219, %s221
      %p228 = scmp.eq.s32.totalorder %s38, 1
      %p229 = por %p227, %p228
      %p230 = scmp.ne.s32.totalorder %s221, %s222
      %p231 = scmp.eq.s32.totalorder %s38, 0
      %p232 = por %p230, %p231
      %p233 = scmp.ne.s32.totalorder %s221, %s222
      %p234 = scmp.eq.s32.totalorder %s39, 1
      %p235 = por %p233, %p234
      %p237 = scmp.ne.s32.totalorder %s222, %s236
      %p238 = scmp.eq.s32.totalorder %s39, 0
      %p239 = por %p237, %p238
      %s241 = sadd.s32 %s240, 1
      %p244 = scmp.eq.s32.totalorder %s33, 1
      %p245 = scmp.ne.s32.totalorder %s240, %s242
      %p246 = scmp.eq.s32.totalorder %s33, 0
      %p247 = por %p245, %p246
      %p248 = scmp.ne.s32.totalorder %s240, %s242
      %p249 = scmp.eq.s32.totalorder %s38, 1
      %p250 = por %p248, %p249
      %p251 = scmp.ne.s32.totalorder %s242, %s243
      %p252 = scmp.eq.s32.totalorder %s38, 0
      %p253 = por %p251, %p252
      %p254 = scmp.ne.s32.totalorder %s242, %s243
      %p255 = scmp.eq.s32.totalorder %s39, 1
      %p256 = por %p254, %p255
      %p258 = scmp.ne.s32.totalorder %s243, %s257
      %p259 = scmp.eq.s32.totalorder %s39, 0
      %p260 = por %p258, %p259
      %s262 = sadd.s32 %s261, 1
      %p265 = scmp.eq.s32.totalorder %s33, 1
      %p266 = scmp.ne.s32.totalorder %s261, %s263
      %p267 = scmp.eq.s32.totalorder %s33, 0
      %p268 = por %p266, %p267
      %p269 = scmp.ne.s32.totalorder %s261, %s263
      %p270 = scmp.eq.s32.totalorder %s38, 1
      %p271 = por %p269, %p270
      %p272 = scmp.ne.s32.totalorder %s263, %s264
      %p273 = scmp.eq.s32.totalorder %s38, 0
      %p274 = por %p272, %p273
      %p275 = scmp.ne.s32.totalorder %s263, %s264
      %p276 = scmp.eq.s32.totalorder %s39, 1
      %p277 = por %p275, %p276
      %p279 = scmp.ne.s32.totalorder %s264, %s278
      %p280 = scmp.eq.s32.totalorder %s39, 0
      %p281 = por %p279, %p280
      %s283 = sadd.s32 %s282, 1
      %p286 = scmp.eq.s32.totalorder %s33, 1
      %p287 = scmp.ne.s32.totalorder %s282, %s284
      %p288 = scmp.eq.s32.totalorder %s33, 0
      %p289 = por %p287, %p288
      %p290 = scmp.ne.s32.totalorder %s282, %s284
      %p291 = scmp.eq.s32.totalorder %s38, 1
      %p292 = por %p290, %p291
      %p293 = scmp.ne.s32.totalorder %s284, %s285
      %p294 = scmp.eq.s32.totalorder %s38, 0
      %p295 = por %p293, %p294
      %p296 = scmp.ne.s32.totalorder %s284, %s285
      %p297 = scmp.eq.s32.totalorder %s39, 1
      %p298 = por %p296, %p297
      %p300 = scmp.ne.s32.totalorder %s285, %s299
      %p301 = scmp.eq.s32.totalorder %s39, 0
      %p302 = por %p300, %p301
      %s304 = sadd.s32 %s303, 1
      %p307 = scmp.eq.s32.totalorder %s33, 1
      %p308 = scmp.ne.s32.totalorder %s303, %s305
      %p309 = scmp.eq.s32.totalorder %s33, 0
      %p310 = por %p308, %p309
      %p311 = scmp.ne.s32.totalorder %s303, %s305
      %p312 = scmp.eq.s32.totalorder %s38, 1
      %p313 = por %p311, %p312
      %p314 = scmp.ne.s32.totalorder %s305, %s306
      %p315 = scmp.eq.s32.totalorder %s38, 0
      %p316 = por %p314, %p315
      %p317 = scmp.ne.s32.totalorder %s305, %s306
      %p318 = scmp.eq.s32.totalorder %s39, 1
      %p319 = por %p317, %p318
      %p321 = scmp.ne.s32.totalorder %s306, %s320
      %p322 = scmp.eq.s32.totalorder %s39, 0
      %p323 = por %p321, %p322
      %s325 = sadd.s32 %s324, 1
      %p328 = scmp.eq.s32.totalorder %s33, 1
      %p329 = scmp.ne.s32.totalorder %s324, %s326
      %p330 = scmp.eq.s32.totalorder %s33, 0
      %p331 = por %p329, %p330
      %p332 = scmp.ne.s32.totalorder %s324, %s326
      %p333 = scmp.eq.s32.totalorder %s38, 1
      %p334 = por %p332, %p333
      %p335 = scmp.ne.s32.totalorder %s326, %s327
      %p336 = scmp.eq.s32.totalorder %s38, 0
      %p337 = por %p335, %p336
      %p338 = scmp.ne.s32.totalorder %s326, %s327
      %p339 = scmp.eq.s32.totalorder %s39, 1
      %p340 = por %p338, %p339
      %p342 = scmp.ne.s32.totalorder %s327, %s341
      %p343 = scmp.eq.s32.totalorder %s39, 0
      %p344 = por %p342, %p343
      %s346 = sadd.s32 %s345, 1
      %p349 = scmp.eq.s32.totalorder %s33, 1
      %p350 = scmp.ne.s32.totalorder %s345, %s347
      %p351 = scmp.eq.s32.totalorder %s33, 0
      %p352 = por %p350, %p351
      %p353 = scmp.ne.s32.totalorder %s345, %s347
      %p354 = scmp.eq.s32.totalorder %s38, 1
      %p355 = por %p353, %p354
      %p356 = scmp.ne.s32.totalorder %s347, %s348
      %p357 = scmp.eq.s32.totalorder %s38, 0
      %p358 = por %p356, %p357
      %p359 = scmp.ne.s32.totalorder %s347, %s348
      %p360 = scmp.eq.s32.totalorder %s39, 1
      %p361 = por %p359, %p360
      %p363 = scmp.ne.s32.totalorder %s348, %s362
      %p364 = scmp.eq.s32.totalorder %s39, 0
      %p365 = por %p363, %p364
      %s367 = sadd.s32 %s366, 1
      %p370 = scmp.eq.s32.totalorder %s33, 1
      %p371 = scmp.ne.s32.totalorder %s366, %s368
      %p372 = scmp.eq.s32.totalorder %s33, 0
      %p373 = por %p371, %p372
      %p374 = scmp.ne.s32.totalorder %s366, %s368
      %p375 = scmp.eq.s32.totalorder %s38, 1
      %p376 = por %p374, %p375
      %p377 = scmp.ne.s32.totalorder %s368, %s369
      %p378 = scmp.eq.s32.totalorder %s38, 0
      %p379 = por %p377, %p378
      %p380 = scmp.ne.s32.totalorder %s368, %s369
      %p381 = scmp.eq.s32.totalorder %s39, 1
      %p382 = por %p380, %p381
      %p384 = scmp.ne.s32.totalorder %s369, %s383
      %p385 = scmp.eq.s32.totalorder %s39, 0
      %p386 = por %p384, %p385
      %s388 = sadd.s32 %s387, 1
      %p391 = scmp.eq.s32.totalorder %s33, 1
      %p392 = scmp.ne.s32.totalorder %s387, %s389
      %p393 = scmp.eq.s32.totalorder %s33, 0
      %p394 = por %p392, %p393
      %p395 = scmp.ne.s32.totalorder %s387, %s389
      %p396 = scmp.eq.s32.totalorder %s38, 1
      %p397 = por %p395, %p396
      %p398 = scmp.ne.s32.totalorder %s389, %s390
      %p399 = scmp.eq.s32.totalorder %s38, 0
      %p400 = por %p398, %p399
      %p401 = scmp.ne.s32.totalorder %s389, %s390
      %p402 = scmp.eq.s32.totalorder %s39, 1
      %p403 = por %p401, %p402
      %p405 = scmp.ne.s32.totalorder %s390, %s404
      %p406 = scmp.eq.s32.totalorder %s39, 0
      %p407 = por %p405, %p406
      %s409 = sadd.s32 %s408, 1
      %p412 = scmp.eq.s32.totalorder %s33, 1
      %p413 = scmp.ne.s32.totalorder %s408, %s410
      %p414 = scmp.eq.s32.totalorder %s33, 0
      %p415 = por %p413, %p414
      %p416 = scmp.ne.s32.totalorder %s408, %s410
      %p417 = scmp.eq.s32.totalorder %s38, 1
      %p418 = por %p416, %p417
      %p419 = scmp.ne.s32.totalorder %s410, %s411
      %p420 = scmp.eq.s32.totalorder %s38, 0
      %p421 = por %p419, %p420
      %p422 = scmp.ne.s32.totalorder %s410, %s411
      %p423 = scmp.eq.s32.totalorder %s39, 1
      %p424 = por %p422, %p423
      %p426 = scmp.ne.s32.totalorder %s411, %s425
      %p427 = scmp.eq.s32.totalorder %s39, 0
      %p428 = por %p426, %p427
      %s429 = ssub.s32 %s40, %s52
      %p430 = scmp.eq.s32.totalorder %s429, 0
      %s432 = sadd.s32 %s431, 1
      %s433 = scalar_select %p430, %s431, %s432
      %p436 = pneg %p430
      %p437 = scmp.eq.s32.totalorder %s33, 1
      %p438 = por %p436, %p437
      %p439 = scmp.ne.s32.totalorder %s431, %s434
      %p440 = scmp.eq.s32.totalorder %s33, 0
      %p441 = por %p439, %p440
      %p442 = scmp.ne.s32.totalorder %s431, %s434
      %p443 = scmp.eq.s32.totalorder %s38, 1
      %p444 = por %p442, %p443
      %p445 = scmp.ne.s32.totalorder %s434, %s435
      %p446 = scmp.eq.s32.totalorder %s38, 0
      %p447 = por %p445, %p446
      %p448 = scmp.ne.s32.totalorder %s434, %s435
      %p449 = scmp.eq.s32.totalorder %s39, 1
      %p450 = por %p448, %p449
      %p452 = scmp.ne.s32.totalorder %s435, %s451
      %p453 = scmp.eq.s32.totalorder %s39, 0
      %p454 = por %p452, %p453
      %p455 = scmp.le.s32.totalorder 1, %s33
      %p456 = scmp.lt.s32.totalorder %s33, 3
      %p457 = pnand %p455, %p456
      %p458 = pneg %p457
      // Predicated region
      $region9: #{tpu_custom_call.1} parent=5 // pred_check
        _
      $region10: #{tpu_custom_call.1} parent=5 // pred_check_branch
        %460 = sbr.rel (%p457) target = $region12
      $region11: #{tpu_custom_call.1} parent=5 // pred_region
        %s461 = ssub.s32 %s33, 1
        // Predicated region
        $region13: #{tpu_custom_call.1} parent=11 // pred_check
          %p462 = pneg %p71
        $region14: #{tpu_custom_call.1} parent=11 // pred_check_branch
          %464 = sbr.rel (%p462) target = $region16
        $region15: #{tpu_custom_call.1} parent=11 // pred_region
          %s466 = ssub.s32 32, 32
          %467 = vsyncadd [#allocation5], %s466
          %s468 = smul.addr %s42, 32
          %s469 = scalar_lea.hbm %s0, %s468
          %s471 = sshll.u32 [#allocation4], 4
          %s472 = int_to_ptr.vmem [resolvable:$true] %s471
          %474 = dma.hbm_to_vmem [thread:$0]  %s469, 32, %s472, [#allocation5]
        $region16: #{tpu_custom_call.1} parent=11 // pred_fallthru
          _
        // Predicated region
        $region17: #{tpu_custom_call.1} parent=11 // pred_check
          %p475 = pneg %p148
        $region18: #{tpu_custom_call.1} parent=11 // pred_check_branch
          %477 = sbr.rel (%p475) target = $region20
        $region19: #{tpu_custom_call.1} parent=11 // pred_region
          %s479 = ssub.s32 256, 256
          %480 = vsyncadd [#allocation11], %s479
          %s481 = sshll.u32 [#allocation10], 4
          %s482 = int_to_ptr.vmem [resolvable:$true] %s481
          %487 = dma.hbm_to_vmem [thread:$0]  %s3, 256, %s482, [#allocation11], 64, 64, 4
        $region20: #{tpu_custom_call.1} parent=11 // pred_fallthru
          _
        // Predicated region
        $region21: #{tpu_custom_call.1} parent=11 // pred_check
          %p488 = pneg %p169
        $region22: #{tpu_custom_call.1} parent=11 // pred_check_branch
          %490 = sbr.rel (%p488) target = $region24
        $region23: #{tpu_custom_call.1} parent=11 // pred_region
          %s492 = ssub.s32 16, 16
          %493 = vsyncadd [#allocation11], %s492
          %s495 = sshll.u32 [#allocation12], 4
          %s496 = int_to_ptr.vmem [resolvable:$true] %s495
          %498 = dma.hbm_to_vmem [thread:$0]  %s4, 16, %s496, [#allocation11]
        $region24: #{tpu_custom_call.1} parent=11 // pred_fallthru
          _
        // Predicated region
        $region25: #{tpu_custom_call.1} parent=11 // pred_check
          %p499 = pneg %p190
        $region26: #{tpu_custom_call.1} parent=11 // pred_check_branch
          %501 = sbr.rel (%p499) target = $region28
        $region27: #{tpu_custom_call.1} parent=11 // pred_region
          %s503 = ssub.s32 32, 32
          %504 = vsyncadd [#allocation14], %s503
          %s506 = sshll.u32 [#allocation13], 4
          %s507 = int_to_ptr.vmem [resolvable:$true] %s506
          %509 = dma.hbm_to_vmem [thread:$0]  %s5, 32, %s507, [#allocation14]
        $region28: #{tpu_custom_call.1} parent=11 // pred_fallthru
          _
        // Predicated region
        $region29: #{tpu_custom_call.1} parent=11 // pred_check
          %p510 = pneg %p211
        $region30: #{tpu_custom_call.1} parent=11 // pred_check_branch
          %512 = sbr.rel (%p510) target = $region32
        $region31: #{tpu_custom_call.1} parent=11 // pred_region
          %s514 = ssub.s32 32, 32
          %515 = vsyncadd [#allocation14], %s514
          %s517 = sshll.u32 [#allocation15], 4
          %s518 = int_to_ptr.vmem [resolvable:$true] %s517
          %520 = dma.hbm_to_vmem [thread:$0]  %s6, 32, %s518, [#allocation14]
        $region32: #{tpu_custom_call.1} parent=11 // pred_fallthru
          _
        // Predicated region
        $region33: #{tpu_custom_call.1} parent=11 // pred_check
          %p521 = pneg %p232
        $region34: #{tpu_custom_call.1} parent=11 // pred_check_branch
          %523 = sbr.rel (%p521) target = $region36
        $region35: #{tpu_custom_call.1} parent=11 // pred_region
          _
        $region36: #{tpu_custom_call.1} parent=11 // pred_fallthru
          _
        // Predicated region
        $region37: #{tpu_custom_call.1} parent=11 // pred_check
          %p524 = pneg %p253
        $region38: #{tpu_custom_call.1} parent=11 // pred_check_branch
          %526 = sbr.rel (%p524) target = $region40
        $region39: #{tpu_custom_call.1} parent=11 // pred_region
          %s528 = ssub.s32 16, 16
          %529 = vsyncadd [#allocation17], %s528
          %s531 = sshll.u32 [#allocation16], 4
          %s532 = int_to_ptr.vmem [resolvable:$true] %s531
          %534 = dma.hbm_to_vmem [thread:$0]  %s8, 16, %s532, [#allocation17]
        $region40: #{tpu_custom_call.1} parent=11 // pred_fallthru
          _
        // Predicated region
        $region41: #{tpu_custom_call.1} parent=11 // pred_check
          %p535 = pneg %p274
        $region42: #{tpu_custom_call.1} parent=11 // pred_check_branch
          %537 = sbr.rel (%p535) target = $region44
        $region43: #{tpu_custom_call.1} parent=11 // pred_region
          %s539 = ssub.s32 256, 256
          %540 = vsyncadd [#allocation17], %s539
          %s541 = sshll.u32 [#allocation18], 4
          %s542 = int_to_ptr.vmem [resolvable:$true] %s541
          %547 = dma.hbm_to_vmem [thread:$0]  %s9, 256, %s542, [#allocation17], 64, 64, 4
        $region44: #{tpu_custom_call.1} parent=11 // pred_fallthru
          _
        // Predicated region
        $region45: #{tpu_custom_call.1} parent=11 // pred_check
          %p548 = pneg %p295
        $region46: #{tpu_custom_call.1} parent=11 // pred_check_branch
          %550 = sbr.rel (%p548) target = $region48
        $region47: #{tpu_custom_call.1} parent=11 // pred_region
          %s552 = ssub.s32 16, 16
          %553 = vsyncadd [#allocation20], %s552
          %s555 = sshll.u32 [#allocation19], 4
          %s556 = int_to_ptr.vmem [resolvable:$true] %s555
          %558 = dma.hbm_to_vmem [thread:$0]  %s10, 16, %s556, [#allocation20]
        $region48: #{tpu_custom_call.1} parent=11 // pred_fallthru
          _
        // Predicated region
        $region49: #{tpu_custom_call.1} parent=11 // pred_check
          %p559 = pneg %p316
        $region50: #{tpu_custom_call.1} parent=11 // pred_check_branch
          %561 = sbr.rel (%p559) target = $region52
        $region51: #{tpu_custom_call.1} parent=11 // pred_region
          %s563 = ssub.s32 1024, 1024
          %564 = vsyncadd [#allocation20], %s563
          %s565 = sshll.u32 [#allocation21], 4
          %s566 = int_to_ptr.vmem [resolvable:$true] %s565
          %571 = dma.hbm_to_vmem [thread:$0]  %s11, 1024, %s566, [#allocation20], 64, 64, 4
        $region52: #{tpu_custom_call.1} parent=11 // pred_fallthru
          _
        // Predicated region
        $region53: #{tpu_custom_call.1} parent=11 // pred_check
          %p572 = pneg %p337
        $region54: #{tpu_custom_call.1} parent=11 // pred_check_branch
          %574 = sbr.rel (%p572) target = $region56
        $region55: #{tpu_custom_call.1} parent=11 // pred_region
          _
        $region56: #{tpu_custom_call.1} parent=11 // pred_fallthru
          _
        // Predicated region
        $region57: #{tpu_custom_call.1} parent=11 // pred_check
          %p575 = pneg %p358
        $region58: #{tpu_custom_call.1} parent=11 // pred_check_branch
          %577 = sbr.rel (%p575) target = $region60
        $region59: #{tpu_custom_call.1} parent=11 // pred_region
          _
        $region60: #{tpu_custom_call.1} parent=11 // pred_fallthru
          _
        // Predicated region
        $region61: #{tpu_custom_call.1} parent=11 // pred_check
          %p578 = pneg %p379
        $region62: #{tpu_custom_call.1} parent=11 // pred_check_branch
          %580 = sbr.rel (%p578) target = $region64
        $region63: #{tpu_custom_call.1} parent=11 // pred_region
          %s582 = ssub.s32 64, 64
          %583 = vsyncadd [#allocation23], %s582
          %s584 = sshll.u32 [#allocation22], 4
          %s585 = int_to_ptr.vmem [resolvable:$true] %s584
          %590 = dma.hbm_to_vmem [thread:$0]  %s14, 64, %s585, [#allocation23], 16, 16, 1
        $region64: #{tpu_custom_call.1} parent=11 // pred_fallthru
          _
        // Predicated region
        $region65: #{tpu_custom_call.1} parent=11 // pred_check
          %p591 = pneg %p400
        $region66: #{tpu_custom_call.1} parent=11 // pred_check_branch
          %593 = sbr.rel (%p591) target = $region68
        $region67: #{tpu_custom_call.1} parent=11 // pred_region
          _
        $region68: #{tpu_custom_call.1} parent=11 // pred_fallthru
          _
        // Predicated region
        $region69: #{tpu_custom_call.1} parent=11 // pred_check
          %p594 = pneg %p421
        $region70: #{tpu_custom_call.1} parent=11 // pred_check_branch
          %596 = sbr.rel (%p594) target = $region72
        $region71: #{tpu_custom_call.1} parent=11 // pred_region
          _
        $region72: #{tpu_custom_call.1} parent=11 // pred_fallthru
          _
      $region12: #{tpu_custom_call.1} parent=5 // pred_fallthru
        _
      %p597 = scmp.lt.s32.totalorder %s33, 2
      // Predicated region
      $region73: #{tpu_custom_call.1} parent=5 // pred_check
        %p598 = pneg %p597
      $region74: #{tpu_custom_call.1} parent=5 // pred_check_branch
        %600 = sbr.rel (%p598) target = $region76
      $region75: #{tpu_custom_call.1} parent=5 // pred_region
        // Predicated region
        $region77: #{tpu_custom_call.1} parent=75 // pred_check
          %p601 = pneg %p93
        $region78: #{tpu_custom_call.1} parent=75 // pred_check_branch
          %603 = sbr.rel (%p601) target = $region80
        $region79: #{tpu_custom_call.1} parent=75 // pred_region
          %s604 = sand.u32 %s33, 1
          %s605 = scalar_lea.sflag [#allocation8], %s604
          %s606 = sand.u32 %s83, 1
          %s607 = smul.addr %s606, 8
          %s608 = scalar_lea.vmem [#allocation7], %s607
          %s609 = smul.u32 2, %s40
          %s611 = ssub.s32 128, 128
          %612 = vsyncadd %s605, %s611
          %s613 = smul.addr %s609, 2
          %s614 = sadd.s32 %s41, %s613
          %s615 = smul.addr %s614, 64
          %s616 = scalar_lea.hbm %s1, %s615
          %s617 = sshll.u32 %s608, 4
          %s618 = int_to_ptr.vmem [resolvable:$true] %s617
          %623 = dma.hbm_to_vmem [thread:$0]  %s616, 128, %s618, %s605, 128, 64, 4
        $region80: #{tpu_custom_call.1} parent=75 // pred_fallthru
          _
        // Predicated region
        $region81: #{tpu_custom_call.1} parent=75 // pred_check
          %p624 = pneg %p121
        $region82: #{tpu_custom_call.1} parent=75 // pred_check_branch
          %626 = sbr.rel (%p624) target = $region84
        $region83: #{tpu_custom_call.1} parent=75 // pred_region
          %s627 = sand.u32 %s33, 1
          %s628 = scalar_lea.sflag [#allocation8], %s627
          %s629 = sand.u32 %s111, 1
          %s630 = smul.addr %s629, 8
          %s631 = scalar_lea.vmem [#allocation9], %s630
          %s632 = smul.u32 2, %s40
          %s634 = ssub.s32 128, 128
          %635 = vsyncadd %s628, %s634
          %s636 = smul.addr %s632, 2
          %s637 = sadd.s32 %s41, %s636
          %s638 = smul.addr %s637, 64
          %s639 = scalar_lea.hbm %s2, %s638
          %s640 = sshll.u32 %s631, 4
          %s641 = int_to_ptr.vmem [resolvable:$true] %s640
          %646 = dma.hbm_to_vmem [thread:$0]  %s639, 128, %s641, %s628, 128, 64, 4
        $region84: #{tpu_custom_call.1} parent=75 // pred_fallthru
          _
      $region76: #{tpu_custom_call.1} parent=5 // pred_fallthru
        _
      %p647 = scmp.le.s32.totalorder 1, %s33
      %p648 = scmp.lt.s32.totalorder %s33, 3
      %p649 = pnand %p647, %p648
      %p650 = pneg %p649
      // Predicated region
      $region85: #{tpu_custom_call.1} parent=5 // pred_check
        _
      $region86: #{tpu_custom_call.1} parent=5 // pred_check_branch
        %652 = sbr.rel (%p649) target = $region88
      $region87: #{tpu_custom_call.1} parent=5 // pred_region
        %s653 = ssub.s32 %s33, 1
        // Predicated region
        $region89: #{tpu_custom_call.1} parent=87 // pred_check
          %p654 = pneg %p71
        $region90: #{tpu_custom_call.1} parent=87 // pred_check_branch
          %656 = sbr.rel (%p654) target = $region92
        $region91: #{tpu_custom_call.1} parent=87 // pred_region
          %657 = dma.done [#allocation5], 32
        $region92: #{tpu_custom_call.1} parent=87 // pred_fallthru
          _
        %s658 = sand.u32 %s38, 1
        %s659 = scalar_lea.sflag [#allocation8], %s658
        %s660 = sand.u32 %s86, 1
        %s661 = smul.addr %s660, 8
        %s662 = scalar_lea.vmem [#allocation7], %s661
        // Predicated region
        $region93: #{tpu_custom_call.1} parent=87 // pred_check
          %p663 = pneg %p99
        $region94: #{tpu_custom_call.1} parent=87 // pred_check_branch
          %665 = sbr.rel (%p663) target = $region96
        $region95: #{tpu_custom_call.1} parent=87 // pred_region
          %666 = dma.done %s659, 128
        $region96: #{tpu_custom_call.1} parent=87 // pred_fallthru
          _
        %s667 = sand.u32 %s38, 1
        %s668 = scalar_lea.sflag [#allocation8], %s667
        %s669 = sand.u32 %s114, 1
        %s670 = smul.addr %s669, 8
        %s671 = scalar_lea.vmem [#allocation9], %s670
        // Predicated region
        $region97: #{tpu_custom_call.1} parent=87 // pred_check
          %p672 = pneg %p127
        $region98: #{tpu_custom_call.1} parent=87 // pred_check_branch
          %674 = sbr.rel (%p672) target = $region100
        $region99: #{tpu_custom_call.1} parent=87 // pred_region
          %675 = dma.done %s668, 128
        $region100: #{tpu_custom_call.1} parent=87 // pred_fallthru
          _
        // Predicated region
        $region101: #{tpu_custom_call.1} parent=87 // pred_check
          %p676 = pneg %p148
        $region102: #{tpu_custom_call.1} parent=87 // pred_check_branch
          %678 = sbr.rel (%p676) target = $region104
        $region103: #{tpu_custom_call.1} parent=87 // pred_region
          %679 = dma.done [#allocation11], 256
        $region104: #{tpu_custom_call.1} parent=87 // pred_fallthru
          _
        // Predicated region
        $region105: #{tpu_custom_call.1} parent=87 // pred_check
          %p680 = pneg %p169
        $region106: #{tpu_custom_call.1} parent=87 // pred_check_branch
          %682 = sbr.rel (%p680) target = $region108
        $region107: #{tpu_custom_call.1} parent=87 // pred_region
          %683 = dma.done [#allocation11], 16
        $region108: #{tpu_custom_call.1} parent=87 // pred_fallthru
          _
        // Predicated region
        $region109: #{tpu_custom_call.1} parent=87 // pred_check
          %p684 = pneg %p190
        $region110: #{tpu_custom_call.1} parent=87 // pred_check_branch
          %686 = sbr.rel (%p684) target = $region112
        $region111: #{tpu_custom_call.1} parent=87 // pred_region
          %687 = dma.done [#allocation14], 32
        $region112: #{tpu_custom_call.1} parent=87 // pred_fallthru
          _
        // Predicated region
        $region113: #{tpu_custom_call.1} parent=87 // pred_check
          %p688 = pneg %p211
        $region114: #{tpu_custom_call.1} parent=87 // pred_check_branch
          %690 = sbr.rel (%p688) target = $region116
        $region115: #{tpu_custom_call.1} parent=87 // pred_region
          %691 = dma.done [#allocation14], 32
        $region116: #{tpu_custom_call.1} parent=87 // pred_fallthru
          _
        // Predicated region
        $region117: #{tpu_custom_call.1} parent=87 // pred_check
          %p692 = pneg %p253
        $region118: #{tpu_custom_call.1} parent=87 // pred_check_branch
          %694 = sbr.rel (%p692) target = $region120
        $region119: #{tpu_custom_call.1} parent=87 // pred_region
          %695 = dma.done [#allocation17], 16
        $region120: #{tpu_custom_call.1} parent=87 // pred_fallthru
          _
        // Predicated region
        $region121: #{tpu_custom_call.1} parent=87 // pred_check
          %p696 = pneg %p274
        $region122: #{tpu_custom_call.1} parent=87 // pred_check_branch
          %698 = sbr.rel (%p696) target = $region124
        $region123: #{tpu_custom_call.1} parent=87 // pred_region
          %699 = dma.done [#allocation17], 256
        $region124: #{tpu_custom_call.1} parent=87 // pred_fallthru
          _
        // Predicated region
        $region125: #{tpu_custom_call.1} parent=87 // pred_check
          %p700 = pneg %p295
        $region126: #{tpu_custom_call.1} parent=87 // pred_check_branch
          %702 = sbr.rel (%p700) target = $region128
        $region127: #{tpu_custom_call.1} parent=87 // pred_region
          %703 = dma.done [#allocation20], 16
        $region128: #{tpu_custom_call.1} parent=87 // pred_fallthru
          _
        // Predicated region
        $region129: #{tpu_custom_call.1} parent=87 // pred_check
          %p704 = pneg %p316
        $region130: #{tpu_custom_call.1} parent=87 // pred_check_branch
          %706 = sbr.rel (%p704) target = $region132
        $region131: #{tpu_custom_call.1} parent=87 // pred_region
          %707 = dma.done [#allocation20], 1024
        $region132: #{tpu_custom_call.1} parent=87 // pred_fallthru
          _
        // Predicated region
        $region133: #{tpu_custom_call.1} parent=87 // pred_check
          %p708 = pneg %p379
        $region134: #{tpu_custom_call.1} parent=87 // pred_check_branch
          %710 = sbr.rel (%p708) target = $region136
        $region135: #{tpu_custom_call.1} parent=87 // pred_region
          %711 = dma.done [#allocation23], 64
        $region136: #{tpu_custom_call.1} parent=87 // pred_fallthru
          _
        %p712 = pneg %p71
        %p713 = pneg %p68
        %s714 = sand.u32 %s38, 1
        %s715 = scalar_lea.sflag [#allocation8], %s714
        %s716 = sand.u32 %s86, 1
        %s717 = smul.addr %s716, 8
        %s718 = scalar_lea.vmem [#allocation7], %s717
        %p719 = pneg %p99
        %p720 = pneg %p96
        %s721 = sand.u32 %s38, 1
        %s722 = scalar_lea.sflag [#allocation8], %s721
        %s723 = sand.u32 %s114, 1
        %s724 = smul.addr %s723, 8
        %s725 = scalar_lea.vmem [#allocation9], %s724
        %p726 = pneg %p127
        %p727 = pneg %p124
        %p728 = pneg %p148
        %p729 = pneg %p145
        %p730 = pneg %p169
        %p731 = pneg %p166
        %p732 = pneg %p190
        %p733 = pneg %p187
        %p734 = pneg %p211
        %p735 = pneg %p208
        %p736 = pneg %p232
        %p737 = pneg %p229
        %p738 = pneg %p253
        %p739 = pneg %p250
        %p740 = pneg %p274
        %p741 = pneg %p271
        %p742 = pneg %p295
        %p743 = pneg %p292
        %p744 = pneg %p316
        %p745 = pneg %p313
        %p746 = pneg %p337
        %p747 = pneg %p334
        %p748 = pneg %p358
        %p749 = pneg %p355
        %p750 = pneg %p379
        %p751 = pneg %p376
        %p752 = pneg %p400
        %p753 = pneg %p397
        %p754 = pneg %p421
        %p755 = pneg %p418
        %p756 = pneg %p447
        %p757 = pneg %p444
        %s758 = smul.u32 2, %s42
        %s759 = smul.u32 2, %s42
        %p761 = scmp.eq.s32.totalorder %s43, 0
        // Predicated region
        $region137: #{tpu_custom_call.1} parent=87 // pred_check
          %p762 = pneg %p761
        $region138: #{tpu_custom_call.1} parent=87 // pred_check_branch
          %764 = sbr.rel (%p762) target = $region140
        $region139: #{tpu_custom_call.1} parent=87 // pred_region
          %vm765 = vcmask 25600
          %766 = vst.msk [vmem:[#allocation2] sm:$0x3] %vm765, 0.0
          %767 = vst.msk [vmem:[#allocation3] sm:$0x3] %vm765, 0.0
        $region140: #{tpu_custom_call.1} parent=87 // pred_fallthru
          _
        %v768 = vld [vmem:[#allocation2] sm:$0x3]
        %v769 = vld [vmem:[%s662] sm:$0xf]
        %v770 = vld [vmem:[%s662 + $0x4] sm:$0xf]
        %vm771 = vcmask 1043456
        %v772 = vsel %vm771, %v769, 0.0
        %773 = vadd.xlane.f32.xlu0 %v772
        %v774 = vpop.xlane.xlu0 %773
        %v775 = vsel %vm771, %v770, 0.0
        %776 = vadd.xlane.f32.xlu0 %v775
        %v777 = vpop.xlane.xlu0 %776
        %v780 = vlaneseq
        %v781 = vand.u32 %v780, 127
        %v782 = vlaneseq
        %v783 = vshrl.u32 %v782, 7
        %v784 = vsub.s32 %v781, %v783
        %v785 = vrot.slane %v774, %v784
        %v786 = vlaneseq
        %v787 = vshrl.u32 %v786, 7
        %v788 = vsub.s32 %v781, %v787
        %v789 = vrot.slane %v777, %v788
        %vm790 = vcmask 1041409
        %v791 = vsel %vm790, %v789, %v785
        %v793 = vadd.f32 %v768, %v791
        %vm794 = vcmask 25600
        %795 = vst.msk [vmem:[#allocation2] sm:$0x3] %vm794, %v793
        %v796 = vld [vmem:[#allocation3] sm:$0x3]
        %v797 = vld [vmem:[%s671] sm:$0xf]
        %v798 = vld [vmem:[%s671 + $0x4] sm:$0xf]
        %v799 = vsel %vm771, %v797, 0.0
        %800 = vadd.xlane.f32.xlu0 %v799
        %v801 = vpop.xlane.xlu0 %800
        %v802 = vsel %vm771, %v798, 0.0
        %803 = vadd.xlane.f32.xlu0 %v802
        %v804 = vpop.xlane.xlu0 %803
        %v807 = vlaneseq
        %v808 = vshrl.u32 %v807, 7
        %v809 = vsub.s32 %v781, %v808
        %v810 = vrot.slane %v801, %v809
        %v811 = vlaneseq
        %v812 = vshrl.u32 %v811, 7
        %v813 = vsub.s32 %v781, %v812
        %v814 = vrot.slane %v804, %v813
        %v815 = vsel %vm790, %v814, %v810
        %v817 = vadd.f32 %v796, %v815
        %818 = vst.msk [vmem:[#allocation3] sm:$0x3] %vm794, %v817
        %p819 = scmp.eq.s32.totalorder %s43, 1
        // Predicated region
        $region141: #{tpu_custom_call.1} parent=87 // pred_check
          %p820 = pneg %p819
        $region142: #{tpu_custom_call.1} parent=87 // pred_check_branch
          %822 = sbr.rel (%p820) target = $region144
        $region143: #{tpu_custom_call.1} parent=87 // pred_region
          %v823 = vld [vmem:[#allocation4] sm:$0x3]
          %v824 = vld [vmem:[#allocation10] sm:$0xf]
          %v825 = vld [vmem:[#allocation10 + $0x4] sm:$0xf]
          %v826 = vld [vmem:[#allocation10 + $0x8] sm:$0xf]
          %v827 = vld [vmem:[#allocation10 + $0xc] sm:$0xf]
          %v828 = vpack.c.bf16 %v823, %v823
          %v829 = vld [vmem:[#allocation12] sm:$0x1]
          %v831 = vlaneseq
          %v832 = vshrl.u32 %v831, 7
          %v833 = vsub.s32 0, %v832
          %v834 = vrot.slane %v829, %v833
          %v840 = vunpack.c.l.b16 %v824
          %v841 = vunpack.c.l.b16 %v825
          %v842 = vunpack.c.l.b16 %v826
          %v843 = vunpack.c.l.b16 %v827
          %v844 = vpack.c.b16 %v841, %v840
          %v845 = vpack.c.b16 %v843, %v842
          %vm848 = vcmask 261120
          %v850 = vsel %vm848, %v828, 0
          %852 = vmatprep.subr.bf16.mxu0 0
          %853 = vmatpush1.bf16.msra.mxu0 %v844
          %854 = vmatprep.subr.bf16.mxu0 0
          %855 = vmatpush1.bf16.msra.mxu0 %v845
          %856 = vmatprep.subr.bf16.mxu0 0
          %857 = vmatpush1.bf16.msra.mxu0 0
          %858 = vmatprep.subr.bf16.mxu0 0
          %859 = vmatpush1.bf16.msra.mxu0 0
          %860 = vmatprep.subr.bf16.mxu0 0
          %861 = vmatpush1.bf16.msra.mxu0 0
          %862 = vmatprep.subr.bf16.mxu0 0
          %863 = vmatpush1.bf16.msra.mxu0 0
          %864 = vmatprep.subr.bf16.mxu0 0
          %865 = vmatpush1.bf16.msra.mxu0 0
          %866 = vmatprep.subr.bf16.mxu0 0
          %867 = vmatpush1.bf16.msra.mxu0 0
          %868 = vmatprep.subr.bf16.mxu0 0
          %869 = vmatpush1.bf16.msra.mxu0 0
          %870 = vmatprep.subr.bf16.mxu0 0
          %871 = vmatpush1.bf16.msra.mxu0 0
          %872 = vmatprep.subr.bf16.mxu0 0
          %873 = vmatpush1.bf16.msra.mxu0 0
          %874 = vmatprep.subr.bf16.mxu0 0
          %875 = vmatpush1.bf16.msra.mxu0 0
          %876 = vmatprep.subr.bf16.mxu0 0
          %877 = vmatpush1.bf16.msra.mxu0 0
          %878 = vmatprep.subr.bf16.mxu0 0
          %879 = vmatpush1.bf16.msra.mxu0 0
          %880 = vmatprep.subr.bf16.mxu0 0
          %881 = vmatpush1.bf16.msra.mxu0 0
          %882 = vmatprep.subr.bf16.mxu0 0
          %883 = vmatpush1.bf16.msra.mxu0 0
          %884 = vmatprep.mubr.bf16.mxu0 0
          %885 = vmatmul.mubr.bf16.gmra.mrb[0].mxu0 %v850
          %v886 = vpop.f32.mrb[0].mxu0
          %v887 = vadd.f32 %v834, %v886
          %v888 = vpop.f32.mrb[0].mxu0
          %v889 = vpop.f32.mrb[0].mxu0
          %v890 = vpop.f32.mrb[0].mxu0
          %891 = vdwg.mxu0
          %v892 = vtanh.pop %v887
          %v893 = vld [vmem:[%s7] sm:$0xf]
          %v894 = vld [vmem:[%s7 + $0x4] sm:$0xf]
          %v895 = vld [vmem:[%s7 + $0x8] sm:$0xf]
          %v896 = vld [vmem:[%s7 + $0xc] sm:$0xf]
          %v897 = vpack.c.bf16 %v892, %v892
          %v898 = vld [vmem:[#allocation16] sm:$0x1]
          %v900 = vlaneseq
          %v901 = vshrl.u32 %v900, 7
          %v902 = vsub.s32 0, %v901
          %v903 = vrot.slane %v898, %v902
          %v909 = vunpack.c.l.b16 %v893
          %v910 = vunpack.c.l.b16 %v894
          %v911 = vunpack.c.l.b16 %v895
          %v912 = vunpack.c.l.b16 %v896
          %v913 = vpack.c.b16 %v910, %v909
          %v914 = vpack.c.b16 %v912, %v911
          %v918 = vsel %vm848, %v897, 0
          %920 = vmatprep.subr.bf16.mxu0 0
          %921 = vmatpush1.bf16.msra.mxu0 %v913
          %922 = vmatprep.subr.bf16.mxu0 0
          %923 = vmatpush1.bf16.msra.mxu0 %v914
          %924 = vmatprep.subr.bf16.mxu0 0
          %925 = vmatpush1.bf16.msra.mxu0 0
          %926 = vmatprep.subr.bf16.mxu0 0
          %927 = vmatpush1.bf16.msra.mxu0 0
          %928 = vmatprep.subr.bf16.mxu0 0
          %929 = vmatpush1.bf16.msra.mxu0 0
          %930 = vmatprep.subr.bf16.mxu0 0
          %931 = vmatpush1.bf16.msra.mxu0 0
          %932 = vmatprep.subr.bf16.mxu0 0
          %933 = vmatpush1.bf16.msra.mxu0 0
          %934 = vmatprep.subr.bf16.mxu0 0
          %935 = vmatpush1.bf16.msra.mxu0 0
          %936 = vmatprep.subr.bf16.mxu0 0
          %937 = vmatpush1.bf16.msra.mxu0 0
          %938 = vmatprep.subr.bf16.mxu0 0
          %939 = vmatpush1.bf16.msra.mxu0 0
          %940 = vmatprep.subr.bf16.mxu0 0
          %941 = vmatpush1.bf16.msra.mxu0 0
          %942 = vmatprep.subr.bf16.mxu0 0
          %943 = vmatpush1.bf16.msra.mxu0 0
          %944 = vmatprep.subr.bf16.mxu0 0
          %945 = vmatpush1.bf16.msra.mxu0 0
          %946 = vmatprep.subr.bf16.mxu0 0
          %947 = vmatpush1.bf16.msra.mxu0 0
          %948 = vmatprep.subr.bf16.mxu0 0
          %949 = vmatpush1.bf16.msra.mxu0 0
          %950 = vmatprep.subr.bf16.mxu0 0
          %951 = vmatpush1.bf16.msra.mxu0 0
          %952 = vmatprep.mubr.bf16.mxu0 0
          %953 = vmatmul.mubr.bf16.gmra.mrb[0].mxu0 %v918
          %v954 = vpop.f32.mrb[0].mxu0
          %v955 = vadd.f32 %v903, %v954
          %v956 = vpop.f32.mrb[0].mxu0
          %v957 = vpop.f32.mrb[0].mxu0
          %v958 = vpop.f32.mrb[0].mxu0
          %959 = vdwg.mxu0
          %v960 = vld [vmem:[#allocation2] sm:$0x3]
          %v961 = vld [vmem:[#allocation13] sm:$0x3]
          %v962 = vpack.c.bf16 %v960, %v960
          %vm963 = vcmask 31744
          %v965 = vsel %vm963, %v962, 0
          %vm967 = vcmask 1041408
          %v969 = vsel %vm967, %v961, 0
          %971 = vmatprep.subr.bf16.mxu0 0
          %972 = vmatpush1.bf16.msra.mxu0 %v969
          %973 = vmatprep.subr.bf16.mxu0 0
          %974 = vmatpush1.bf16.msra.mxu0 0
          %975 = vmatprep.subr.bf16.mxu0 0
          %976 = vmatpush1.bf16.msra.mxu0 0
          %977 = vmatprep.subr.bf16.mxu0 0
          %978 = vmatpush1.bf16.msra.mxu0 0
          %979 = vmatprep.subr.bf16.mxu0 0
          %980 = vmatpush1.bf16.msra.mxu0 0
          %981 = vmatprep.subr.bf16.mxu0 0
          %982 = vmatpush1.bf16.msra.mxu0 0
          %983 = vmatprep.subr.bf16.mxu0 0
          %984 = vmatpush1.bf16.msra.mxu0 0
          %985 = vmatprep.subr.bf16.mxu0 0
          %986 = vmatpush1.bf16.msra.mxu0 0
          %987 = vmatprep.subr.bf16.mxu0 0
          %988 = vmatpush1.bf16.msra.mxu0 0
          %989 = vmatprep.subr.bf16.mxu0 0
          %990 = vmatpush1.bf16.msra.mxu0 0
          %991 = vmatprep.subr.bf16.mxu0 0
          %992 = vmatpush1.bf16.msra.mxu0 0
          %993 = vmatprep.subr.bf16.mxu0 0
          %994 = vmatpush1.bf16.msra.mxu0 0
          %995 = vmatprep.subr.bf16.mxu0 0
          %996 = vmatpush1.bf16.msra.mxu0 0
          %997 = vmatprep.subr.bf16.mxu0 0
          %998 = vmatpush1.bf16.msra.mxu0 0
          %999 = vmatprep.subr.bf16.mxu0 0
          %1000 = vmatpush1.bf16.msra.mxu0 0
          %1001 = vmatprep.subr.bf16.mxu0 0
          %1002 = vmatpush1.bf16.msra.mxu0 0
          %1003 = vmatprep.mubr.bf16.mxu0 0
          %1004 = vmatmul.mubr.bf16.gmra.mrb[0].mxu0 %v965
          %v1005 = vpop.f32.mrb[0].mxu0
          %v1006 = vadd.f32 0.0, %v1005
          %v1007 = vpop.f32.mrb[0].mxu0
          %v1008 = vpop.f32.mrb[0].mxu0
          %v1009 = vpop.f32.mrb[0].mxu0
          %1010 = vdwg.mxu0
          %v1011 = vld [vmem:[#allocation3] sm:$0x3]
          %v1012 = vld [vmem:[#allocation15] sm:$0x3]
          %v1013 = vpack.c.bf16 %v1011, %v1011
          %v1015 = vsel %vm963, %v1013, 0
          %v1018 = vsel %vm967, %v1012, 0
          %1020 = vmatprep.subr.bf16.mxu0 0
          %1021 = vmatpush1.bf16.msra.mxu0 %v1018
          %1022 = vmatprep.subr.bf16.mxu0 0
          %1023 = vmatpush1.bf16.msra.mxu0 0
          %1024 = vmatprep.subr.bf16.mxu0 0
          %1025 = vmatpush1.bf16.msra.mxu0 0
          %1026 = vmatprep.subr.bf16.mxu0 0
          %1027 = vmatpush1.bf16.msra.mxu0 0
          %1028 = vmatprep.subr.bf16.mxu0 0
          %1029 = vmatpush1.bf16.msra.mxu0 0
          %1030 = vmatprep.subr.bf16.mxu0 0
          %1031 = vmatpush1.bf16.msra.mxu0 0
          %1032 = vmatprep.subr.bf16.mxu0 0
          %1033 = vmatpush1.bf16.msra.mxu0 0
          %1034 = vmatprep.subr.bf16.mxu0 0
          %1035 = vmatpush1.bf16.msra.mxu0 0
          %1036 = vmatprep.subr.bf16.mxu0 0
          %1037 = vmatpush1.bf16.msra.mxu0 0
          %1038 = vmatprep.subr.bf16.mxu0 0
          %1039 = vmatpush1.bf16.msra.mxu0 0
          %1040 = vmatprep.subr.bf16.mxu0 0
          %1041 = vmatpush1.bf16.msra.mxu0 0
          %1042 = vmatprep.subr.bf16.mxu0 0
          %1043 = vmatpush1.bf16.msra.mxu0 0
          %1044 = vmatprep.subr.bf16.mxu0 0
          %1045 = vmatpush1.bf16.msra.mxu0 0
          %1046 = vmatprep.subr.bf16.mxu0 0
          %1047 = vmatpush1.bf16.msra.mxu0 0
          %1048 = vmatprep.subr.bf16.mxu0 0
          %1049 = vmatpush1.bf16.msra.mxu0 0
          %1050 = vmatprep.subr.bf16.mxu0 0
          %1051 = vmatpush1.bf16.msra.mxu0 0
          %1052 = vmatprep.mubr.bf16.mxu0 0
          %1053 = vmatmul.mubr.bf16.gmra.mrb[0].mxu0 %v1015
          %v1054 = vpop.f32.mrb[0].mxu0
          %v1055 = vadd.f32 0.0, %v1054
          %v1056 = vpop.f32.mrb[0].mxu0
          %v1057 = vpop.f32.mrb[0].mxu0
          %v1058 = vpop.f32.mrb[0].mxu0
          %1059 = vdwg.mxu0
          %v1060 = vld [vmem:[#allocation18] sm:$0xf]
          %v1061 = vld [vmem:[#allocation18 + $0x4] sm:$0xf]
          %v1062 = vld [vmem:[#allocation18 + $0x8] sm:$0xf]
          %v1063 = vld [vmem:[#allocation18 + $0xc] sm:$0xf]
          %v1064 = vpack.c.bf16 %v1006, %v1006
          %v1065 = vpack.c.bf16 %v1055, %v1055
          %v1068 = vunpack.c.l.b16 %v1062
          %v1069 = vunpack.c.l.b16 %v1063
          %v1070 = vpack.c.b16 %v1069, %v1068
          %vm1072 = vcmask 130048
          %v1074 = vsel %vm1072, %v1065, 0
          %1076 = vmatprep.subr.bf16.mxu0 0
          %1077 = vmatpush1.bf16.msra.mxu0 %v1070
          %1078 = vmatprep.subr.bf16.mxu0 0
          %1079 = vmatpush1.bf16.msra.mxu0 0
          %1080 = vmatprep.subr.bf16.mxu0 0
          %1081 = vmatpush1.bf16.msra.mxu0 0
          %1082 = vmatprep.subr.bf16.mxu0 0
          %1083 = vmatpush1.bf16.msra.mxu0 0
          %1084 = vmatprep.subr.bf16.mxu0 0
          %1085 = vmatpush1.bf16.msra.mxu0 0
          %1086 = vmatprep.subr.bf16.mxu0 0
          %1087 = vmatpush1.bf16.msra.mxu0 0
          %1088 = vmatprep.subr.bf16.mxu0 0
          %1089 = vmatpush1.bf16.msra.mxu0 0
          %1090 = vmatprep.subr.bf16.mxu0 0
          %1091 = vmatpush1.bf16.msra.mxu0 0
          %1092 = vmatprep.subr.bf16.mxu0 0
          %1093 = vmatpush1.bf16.msra.mxu0 0
          %1094 = vmatprep.subr.bf16.mxu0 0
          %1095 = vmatpush1.bf16.msra.mxu0 0
          %1096 = vmatprep.subr.bf16.mxu0 0
          %1097 = vmatpush1.bf16.msra.mxu0 0
          %1098 = vmatprep.subr.bf16.mxu0 0
          %1099 = vmatpush1.bf16.msra.mxu0 0
          %1100 = vmatprep.subr.bf16.mxu0 0
          %1101 = vmatpush1.bf16.msra.mxu0 0
          %1102 = vmatprep.subr.bf16.mxu0 0
          %1103 = vmatpush1.bf16.msra.mxu0 0
          %1104 = vmatprep.subr.bf16.mxu0 0
          %1105 = vmatpush1.bf16.msra.mxu0 0
          %1106 = vmatprep.subr.bf16.mxu0 0
          %1107 = vmatpush1.bf16.msra.mxu0 0
          %1108 = vmatprep.mubr.bf16.mxu0 0
          %1109 = vmatmul.mubr.bf16.gmra.mrb[0].mxu0 %v1074
          %v1110 = vpop.f32.mrb[0].mxu0
          %v1111 = vadd.f32 0.0, %v1110
          %v1112 = vpop.f32.mrb[0].mxu0
          %v1113 = vpop.f32.mrb[0].mxu0
          %v1114 = vpop.f32.mrb[0].mxu0
          %1115 = vdwg.mxu0
          %v1118 = vunpack.c.l.b16 %v1060
          %v1119 = vunpack.c.l.b16 %v1061
          %v1120 = vpack.c.b16 %v1119, %v1118
          %v1123 = vsel %vm1072, %v1064, 0
          %1125 = vmatprep.subr.bf16.mxu0 0
          %1126 = vmatpush1.bf16.msra.mxu0 %v1120
          %1127 = vmatprep.subr.bf16.mxu0 0
          %1128 = vmatpush1.bf16.msra.mxu0 0
          %1129 = vmatprep.subr.bf16.mxu0 0
          %1130 = vmatpush1.bf16.msra.mxu0 0
          %1131 = vmatprep.subr.bf16.mxu0 0
          %1132 = vmatpush1.bf16.msra.mxu0 0
          %1133 = vmatprep.subr.bf16.mxu0 0
          %1134 = vmatpush1.bf16.msra.mxu0 0
          %1135 = vmatprep.subr.bf16.mxu0 0
          %1136 = vmatpush1.bf16.msra.mxu0 0
          %1137 = vmatprep.subr.bf16.mxu0 0
          %1138 = vmatpush1.bf16.msra.mxu0 0
          %1139 = vmatprep.subr.bf16.mxu0 0
          %1140 = vmatpush1.bf16.msra.mxu0 0
          %1141 = vmatprep.subr.bf16.mxu0 0
          %1142 = vmatpush1.bf16.msra.mxu0 0
          %1143 = vmatprep.subr.bf16.mxu0 0
          %1144 = vmatpush1.bf16.msra.mxu0 0
          %1145 = vmatprep.subr.bf16.mxu0 0
          %1146 = vmatpush1.bf16.msra.mxu0 0
          %1147 = vmatprep.subr.bf16.mxu0 0
          %1148 = vmatpush1.bf16.msra.mxu0 0
          %1149 = vmatprep.subr.bf16.mxu0 0
          %1150 = vmatpush1.bf16.msra.mxu0 0
          %1151 = vmatprep.subr.bf16.mxu0 0
          %1152 = vmatpush1.bf16.msra.mxu0 0
          %1153 = vmatprep.subr.bf16.mxu0 0
          %1154 = vmatpush1.bf16.msra.mxu0 0
          %1155 = vmatprep.subr.bf16.mxu0 0
          %1156 = vmatpush1.bf16.msra.mxu0 0
          %1157 = vmatprep.mubr.bf16.mxu0 0
          %1158 = vmatmul.mubr.bf16.gmra.mrb[0].mxu0 %v1123
          %v1159 = vpop.f32.mrb[0].mxu0
          %v1160 = vadd.f32 %v1111, %v1159
          %v1161 = vpop.f32.mrb[0].mxu0
          %v1162 = vpop.f32.mrb[0].mxu0
          %v1163 = vpop.f32.mrb[0].mxu0
          %1164 = vdwg.mxu0
          %v1165 = vld [vmem:[#allocation19] sm:$0x1]
          %v1167 = vlaneseq
          %v1168 = vshrl.u32 %v1167, 7
          %v1169 = vsub.s32 0, %v1168
          %v1170 = vrot.slane %v1165, %v1169
          %v1172 = vadd.f32 %v1160, %v1170
          %v1173 = vld [vmem:[#allocation21] sm:$0xf]
          %v1174 = vld [vmem:[#allocation21 + $0x4] sm:$0xf]
          %v1175 = vld [vmem:[#allocation21 + $0x8] sm:$0xf]
          %v1176 = vld [vmem:[#allocation21 + $0xc] sm:$0xf]
          %v1177 = vld [vmem:[#allocation21 + $0x10] sm:$0xf]
          %v1178 = vld [vmem:[#allocation21 + $0x14] sm:$0xf]
          %v1179 = vld [vmem:[#allocation21 + $0x18] sm:$0xf]
          %v1180 = vld [vmem:[#allocation21 + $0x1c] sm:$0xf]
          %v1181 = vld [vmem:[#allocation21 + $0x20] sm:$0xf]
          %v1182 = vld [vmem:[#allocation21 + $0x24] sm:$0xf]
          %v1183 = vld [vmem:[#allocation21 + $0x28] sm:$0xf]
          %v1184 = vld [vmem:[#allocation21 + $0x2c] sm:$0xf]
          %v1185 = vld [vmem:[#allocation21 + $0x30] sm:$0xf]
          %v1186 = vld [vmem:[#allocation21 + $0x34] sm:$0xf]
          %v1187 = vld [vmem:[#allocation21 + $0x38] sm:$0xf]
          %v1188 = vld [vmem:[#allocation21 + $0x3c] sm:$0xf]
          %v1189 = vld [vmem:[%s12] sm:$0x1]
          %v1190 = vld [vmem:[%s12 + $0x1] sm:$0x1]
          %v1191 = vld [vmem:[%s12 + $0x2] sm:$0x1]
          %v1192 = vld [vmem:[%s12 + $0x3] sm:$0x1]
          %v1193 = vld [vmem:[%s13] sm:$0x1]
          %v1194 = vld [vmem:[%s13 + $0x1] sm:$0x1]
          %v1195 = vld [vmem:[%s13 + $0x2] sm:$0x1]
          %v1196 = vld [vmem:[%s13 + $0x3] sm:$0x1]
          %v1197 = vld [vmem:[#allocation22] sm:$0x1]
          %v1198 = vld [vmem:[#allocation22 + $0x1] sm:$0x1]
          %v1199 = vld [vmem:[#allocation22 + $0x2] sm:$0x1]
          %v1200 = vld [vmem:[#allocation22 + $0x3] sm:$0x1]
          %v1201 = vmul.f32 %v955, 0.5
          %v1202 = vmul.f32 %v1172, 0.5
          %v1203 = vmul.f32 %v955, 0.044715
          %v1204 = vmul.f32 %v1172, 0.044715
          %v1205 = vmul.f32 %v1203, %v955
          %v1206 = vmul.f32 %v1204, %v1172
          %v1207 = vmul.f32 %v1205, %v955
          %v1208 = vmul.f32 %v1206, %v1172
          %v1209 = vadd.f32 %v955, %v1207
          %v1210 = vadd.f32 %v1172, %v1208
          %v1211 = vmul.f32 %v1209, 0.7978846
          %v1212 = vmul.f32 %v1210, 0.7978846
          %v1213 = vtanh.pop %v1211
          %v1214 = vtanh.pop %v1212
          %v1215 = vadd.f32 %v1213, 1.0
          %v1216 = vadd.f32 %v1214, 1.0
          %v1217 = vmul.f32 %v1201, %v1215
          %v1218 = vmul.f32 %v1202, %v1216
          %v1219 = vpack.c.bf16 %v1217, %v1217
          %v1220 = vpack.c.bf16 %v1218, %v1218
          %v1223 = vlaneseq
          %v1224 = vshrl.u32 %v1223, 7
          %v1225 = vsub.s32 0, %v1224
          %v1226 = vrot.slane %v1189, %v1225
          %v1227 = vlaneseq
          %v1228 = vshrl.u32 %v1227, 7
          %v1229 = vsub.s32 0, %v1228
          %v1230 = vrot.slane %v1190, %v1229
          %v1237 = vunpack.c.l.b16 %v1173
          %v1238 = vunpack.c.l.b16 %v1174
          %v1239 = vunpack.c.l.b16 %v1175
          %v1240 = vunpack.c.l.b16 %v1176
          %v1241 = vpack.c.b16 %v1238, %v1237
          %v1242 = vpack.c.b16 %v1240, %v1239
          %v1246 = vsel %vm848, %v1219, 0
          %1248 = vmatprep.subr.bf16.mxu0 0
          %1249 = vmatpush1.bf16.msra.mxu0 %v1241
          %1250 = vmatprep.subr.bf16.mxu0 0
          %1251 = vmatpush1.bf16.msra.mxu0 %v1242
          %1252 = vmatprep.subr.bf16.mxu0 0
          %1253 = vmatpush1.bf16.msra.mxu0 0
          %1254 = vmatprep.subr.bf16.mxu0 0
          %1255 = vmatpush1.bf16.msra.mxu0 0
          %1256 = vmatprep.subr.bf16.mxu0 0
          %1257 = vmatpush1.bf16.msra.mxu0 0
          %1258 = vmatprep.subr.bf16.mxu0 0
          %1259 = vmatpush1.bf16.msra.mxu0 0
          %1260 = vmatprep.subr.bf16.mxu0 0
          %1261 = vmatpush1.bf16.msra.mxu0 0
          %1262 = vmatprep.subr.bf16.mxu0 0
          %1263 = vmatpush1.bf16.msra.mxu0 0
          %1264 = vmatprep.subr.bf16.mxu0 0
          %1265 = vmatpush1.bf16.msra.mxu0 0
          %1266 = vmatprep.subr.bf16.mxu0 0
          %1267 = vmatpush1.bf16.msra.mxu0 0
          %1268 = vmatprep.subr.bf16.mxu0 0
          %1269 = vmatpush1.bf16.msra.mxu0 0
          %1270 = vmatprep.subr.bf16.mxu0 0
          %1271 = vmatpush1.bf16.msra.mxu0 0
          %1272 = vmatprep.subr.bf16.mxu0 0
          %1273 = vmatpush1.bf16.msra.mxu0 0
          %1274 = vmatprep.subr.bf16.mxu0 0
          %1275 = vmatpush1.bf16.msra.mxu0 0
          %1276 = vmatprep.subr.bf16.mxu0 0
          %1277 = vmatpush1.bf16.msra.mxu0 0
          %1278 = vmatprep.subr.bf16.mxu0 0
          %1279 = vmatpush1.bf16.msra.mxu0 0
          %1280 = vmatprep.mubr.bf16.mxu0 0
          %1281 = vmatmul.mubr.bf16.gmra.mrb[0].mxu0 %v1246
          %v1282 = vpop.f32.mrb[0].mxu0
          %v1283 = vadd.f32 %v1226, %v1282
          %v1284 = vpop.f32.mrb[0].mxu0
          %v1285 = vpop.f32.mrb[0].mxu0
          %v1286 = vpop.f32.mrb[0].mxu0
          %1287 = vdwg.mxu0
          %v1292 = vunpack.c.l.b16 %v1177
          %v1293 = vunpack.c.l.b16 %v1178
          %v1294 = vunpack.c.l.b16 %v1179
          %v1295 = vunpack.c.l.b16 %v1180
          %v1296 = vpack.c.b16 %v1293, %v1292
          %v1297 = vpack.c.b16 %v1295, %v1294
          %v1301 = vsel %vm848, %v1220, 0
          %1303 = vmatprep.subr.bf16.mxu0 0
          %1304 = vmatpush1.bf16.msra.mxu0 %v1296
          %1305 = vmatprep.subr.bf16.mxu0 0
          %1306 = vmatpush1.bf16.msra.mxu0 %v1297
          %1307 = vmatprep.subr.bf16.mxu0 0
          %1308 = vmatpush1.bf16.msra.mxu0 0
          %1309 = vmatprep.subr.bf16.mxu0 0
          %1310 = vmatpush1.bf16.msra.mxu0 0
          %1311 = vmatprep.subr.bf16.mxu0 0
          %1312 = vmatpush1.bf16.msra.mxu0 0
          %1313 = vmatprep.subr.bf16.mxu0 0
          %1314 = vmatpush1.bf16.msra.mxu0 0
          %1315 = vmatprep.subr.bf16.mxu0 0
          %1316 = vmatpush1.bf16.msra.mxu0 0
          %1317 = vmatprep.subr.bf16.mxu0 0
          %1318 = vmatpush1.bf16.msra.mxu0 0
          %1319 = vmatprep.subr.bf16.mxu0 0
          %1320 = vmatpush1.bf16.msra.mxu0 0
          %1321 = vmatprep.subr.bf16.mxu0 0
          %1322 = vmatpush1.bf16.msra.mxu0 0
          %1323 = vmatprep.subr.bf16.mxu0 0
          %1324 = vmatpush1.bf16.msra.mxu0 0
          %1325 = vmatprep.subr.bf16.mxu0 0
          %1326 = vmatpush1.bf16.msra.mxu0 0
          %1327 = vmatprep.subr.bf16.mxu0 0
          %1328 = vmatpush1.bf16.msra.mxu0 0
          %1329 = vmatprep.subr.bf16.mxu0 0
          %1330 = vmatpush1.bf16.msra.mxu0 0
          %1331 = vmatprep.subr.bf16.mxu0 0
          %1332 = vmatpush1.bf16.msra.mxu0 0
          %1333 = vmatprep.subr.bf16.mxu0 0
          %1334 = vmatpush1.bf16.msra.mxu0 0
          %1335 = vmatprep.mubr.bf16.mxu0 0
          %1336 = vmatmul.mubr.bf16.gmra.mrb[0].mxu0 %v1301
          %v1337 = vpop.f32.mrb[0].mxu0
          %v1338 = vadd.f32 %v1230, %v1337
          %v1339 = vpop.f32.mrb[0].mxu0
          %v1340 = vpop.f32.mrb[0].mxu0
          %v1341 = vpop.f32.mrb[0].mxu0
          %1342 = vdwg.mxu0
          %v1343 = vadd.f32 %v1283, %v955
          %v1344 = vadd.f32 %v1338, %v1172
          %vm1345 = vcmask 254976
          %v1346 = vsel %vm1345, %v1343, 0.0
          %1347 = vadd.xlane.f32.xlu0 %v1346
          %v1348 = vpop.xlane.xlu0 %1347
          %v1349 = vsel %vm1345, %v1344, 0.0
          %1350 = vadd.xlane.f32.xlu0 %v1349
          %v1351 = vpop.xlane.xlu0 %1350
          %v1352 = vrcp.pop 32.0
          %v1353 = vmul.f32 %v1348, %v1352
          %v1354 = vmul.f32 %v1351, %v1352
          %v1355 = vsub.f32 %v1343, %v1353
          %v1356 = vsub.f32 %v1344, %v1354
          %v1357 = vmul.f32 %v1355, %v1355
          %v1358 = vmul.f32 %v1356, %v1356
          %v1359 = vsel %vm1345, %v1357, 0.0
          %1360 = vadd.xlane.f32.xlu0 %v1359
          %v1361 = vpop.xlane.xlu0 %1360
          %v1362 = vsel %vm1345, %v1358, 0.0
          %1363 = vadd.xlane.f32.xlu0 %v1362
          %v1364 = vpop.xlane.xlu0 %1363
          %v1365 = vmul.f32 %v1361, %v1352
          %v1366 = vmul.f32 %v1364, %v1352
          %v1367 = vadd.f32 %v1365, 1e-05
          %v1368 = vadd.f32 %v1366, 1e-05
          %v1369 = vrsqrt.pop %v1367
          %v1370 = vrsqrt.pop %v1368
          %v1371 = vmul.f32 %v1355, %v1369
          %v1372 = vmul.f32 %v1356, %v1370
          %v1375 = vlaneseq
          %v1376 = vshrl.u32 %v1375, 7
          %v1377 = vsub.s32 0, %v1376
          %v1378 = vrot.slane %v1193, %v1377
          %v1379 = vlaneseq
          %v1380 = vshrl.u32 %v1379, 7
          %v1381 = vsub.s32 0, %v1380
          %v1382 = vrot.slane %v1194, %v1381
          %v1385 = vmul.f32 %v1371, %v1378
          %v1386 = vmul.f32 %v1372, %v1382
          %v1389 = vlaneseq
          %v1390 = vshrl.u32 %v1389, 7
          %v1391 = vsub.s32 0, %v1390
          %v1392 = vrot.slane %v1197, %v1391
          %v1393 = vlaneseq
          %v1394 = vshrl.u32 %v1393, 7
          %v1395 = vsub.s32 0, %v1394
          %v1396 = vrot.slane %v1198, %v1395
          %v1399 = vadd.f32 %v1385, %v1392
          %v1400 = vadd.f32 %v1386, %v1396
          %v1401 = vmul.f32 %v1399, 0.5
          %v1402 = vmul.f32 %v1400, 0.5
          %v1403 = vmul.f32 %v1399, 0.044715
          %v1404 = vmul.f32 %v1400, 0.044715
          %v1405 = vmul.f32 %v1403, %v1399
          %v1406 = vmul.f32 %v1404, %v1400
          %v1407 = vmul.f32 %v1405, %v1399
          %v1408 = vmul.f32 %v1406, %v1400
          %v1409 = vadd.f32 %v1399, %v1407
          %v1410 = vadd.f32 %v1400, %v1408
          %v1411 = vmul.f32 %v1409, 0.7978846
          %v1412 = vmul.f32 %v1410, 0.7978846
          %v1413 = vtanh.pop %v1411
          %v1414 = vtanh.pop %v1412
          %v1415 = vadd.f32 %v1413, 1.0
          %v1416 = vadd.f32 %v1414, 1.0
          %v1417 = vmul.f32 %v1401, %v1415
          %v1418 = vmul.f32 %v1402, %v1416
          %v1419 = vpack.c.bf16 %v1417, %v1417
          %v1420 = vpack.c.bf16 %v1418, %v1418
          %v1423 = vlaneseq
          %v1424 = vshrl.u32 %v1423, 7
          %v1425 = vsub.s32 0, %v1424
          %v1426 = vrot.slane %v1191, %v1425
          %v1427 = vlaneseq
          %v1428 = vshrl.u32 %v1427, 7
          %v1429 = vsub.s32 0, %v1428
          %v1430 = vrot.slane %v1192, %v1429
          %v1437 = vunpack.c.l.b16 %v1181
          %v1438 = vunpack.c.l.b16 %v1182
          %v1439 = vunpack.c.l.b16 %v1183
          %v1440 = vunpack.c.l.b16 %v1184
          %v1441 = vpack.c.b16 %v1438, %v1437
          %v1442 = vpack.c.b16 %v1440, %v1439
          %v1446 = vsel %vm848, %v1419, 0
          %1448 = vmatprep.subr.bf16.mxu0 0
          %1449 = vmatpush1.bf16.msra.mxu0 %v1441
          %1450 = vmatprep.subr.bf16.mxu0 0
          %1451 = vmatpush1.bf16.msra.mxu0 %v1442
          %1452 = vmatprep.subr.bf16.mxu0 0
          %1453 = vmatpush1.bf16.msra.mxu0 0
          %1454 = vmatprep.subr.bf16.mxu0 0
          %1455 = vmatpush1.bf16.msra.mxu0 0
          %1456 = vmatprep.subr.bf16.mxu0 0
          %1457 = vmatpush1.bf16.msra.mxu0 0
          %1458 = vmatprep.subr.bf16.mxu0 0
          %1459 = vmatpush1.bf16.msra.mxu0 0
          %1460 = vmatprep.subr.bf16.mxu0 0
          %1461 = vmatpush1.bf16.msra.mxu0 0
          %1462 = vmatprep.subr.bf16.mxu0 0
          %1463 = vmatpush1.bf16.msra.mxu0 0
          %1464 = vmatprep.subr.bf16.mxu0 0
          %1465 = vmatpush1.bf16.msra.mxu0 0
          %1466 = vmatprep.subr.bf16.mxu0 0
          %1467 = vmatpush1.bf16.msra.mxu0 0
          %1468 = vmatprep.subr.bf16.mxu0 0
          %1469 = vmatpush1.bf16.msra.mxu0 0
          %1470 = vmatprep.subr.bf16.mxu0 0
          %1471 = vmatpush1.bf16.msra.mxu0 0
          %1472 = vmatprep.subr.bf16.mxu0 0
          %1473 = vmatpush1.bf16.msra.mxu0 0
          %1474 = vmatprep.subr.bf16.mxu0 0
          %1475 = vmatpush1.bf16.msra.mxu0 0
          %1476 = vmatprep.subr.bf16.mxu0 0
          %1477 = vmatpush1.bf16.msra.mxu0 0
          %1478 = vmatprep.subr.bf16.mxu0 0
          %1479 = vmatpush1.bf16.msra.mxu0 0
          %1480 = vmatprep.mubr.bf16.mxu0 0
          %1481 = vmatmul.mubr.bf16.gmra.mrb[0].mxu0 %v1446
          %v1482 = vpop.f32.mrb[0].mxu0
          %v1483 = vadd.f32 %v1426, %v1482
          %v1484 = vpop.f32.mrb[0].mxu0
          %v1485 = vpop.f32.mrb[0].mxu0
          %v1486 = vpop.f32.mrb[0].mxu0
          %1487 = vdwg.mxu0
          %v1492 = vunpack.c.l.b16 %v1185
          %v1493 = vunpack.c.l.b16 %v1186
          %v1494 = vunpack.c.l.b16 %v1187
          %v1495 = vunpack.c.l.b16 %v1188
          %v1496 = vpack.c.b16 %v1493, %v1492
          %v1497 = vpack.c.b16 %v1495, %v1494
          %v1501 = vsel %vm848, %v1420, 0
          %1503 = vmatprep.subr.bf16.mxu0 0
          %1504 = vmatpush1.bf16.msra.mxu0 %v1496
          %1505 = vmatprep.subr.bf16.mxu0 0
          %1506 = vmatpush1.bf16.msra.mxu0 %v1497
          %1507 = vmatprep.subr.bf16.mxu0 0
          %1508 = vmatpush1.bf16.msra.mxu0 0
          %1509 = vmatprep.subr.bf16.mxu0 0
          %1510 = vmatpush1.bf16.msra.mxu0 0
          %1511 = vmatprep.subr.bf16.mxu0 0
          %1512 = vmatpush1.bf16.msra.mxu0 0
          %1513 = vmatprep.subr.bf16.mxu0 0
          %1514 = vmatpush1.bf16.msra.mxu0 0
          %1515 = vmatprep.subr.bf16.mxu0 0
          %1516 = vmatpush1.bf16.msra.mxu0 0
          %1517 = vmatprep.subr.bf16.mxu0 0
          %1518 = vmatpush1.bf16.msra.mxu0 0
          %1519 = vmatprep.subr.bf16.mxu0 0
          %1520 = vmatpush1.bf16.msra.mxu0 0
          %1521 = vmatprep.subr.bf16.mxu0 0
          %1522 = vmatpush1.bf16.msra.mxu0 0
          %1523 = vmatprep.subr.bf16.mxu0 0
          %1524 = vmatpush1.bf16.msra.mxu0 0
          %1525 = vmatprep.subr.bf16.mxu0 0
          %1526 = vmatpush1.bf16.msra.mxu0 0
          %1527 = vmatprep.subr.bf16.mxu0 0
          %1528 = vmatpush1.bf16.msra.mxu0 0
          %1529 = vmatprep.subr.bf16.mxu0 0
          %1530 = vmatpush1.bf16.msra.mxu0 0
          %1531 = vmatprep.subr.bf16.mxu0 0
          %1532 = vmatpush1.bf16.msra.mxu0 0
          %1533 = vmatprep.subr.bf16.mxu0 0
          %1534 = vmatpush1.bf16.msra.mxu0 0
          %1535 = vmatprep.mubr.bf16.mxu0 0
          %1536 = vmatmul.mubr.bf16.gmra.mrb[0].mxu0 %v1501
          %v1537 = vpop.f32.mrb[0].mxu0
          %v1538 = vadd.f32 %v1430, %v1537
          %v1539 = vpop.f32.mrb[0].mxu0
          %v1540 = vpop.f32.mrb[0].mxu0
          %v1541 = vpop.f32.mrb[0].mxu0
          %1542 = vdwg.mxu0
          %v1543 = vadd.f32 %v1483, %v1399
          %v1544 = vadd.f32 %v1538, %v1400
          %v1545 = vsel %vm1345, %v1543, 0.0
          %1546 = vadd.xlane.f32.xlu0 %v1545
          %v1547 = vpop.xlane.xlu0 %1546
          %v1548 = vsel %vm1345, %v1544, 0.0
          %1549 = vadd.xlane.f32.xlu0 %v1548
          %v1550 = vpop.xlane.xlu0 %1549
          %v1551 = vmul.f32 %v1547, %v1352
          %v1552 = vmul.f32 %v1550, %v1352
          %v1553 = vsub.f32 %v1543, %v1551
          %v1554 = vsub.f32 %v1544, %v1552
          %v1555 = vmul.f32 %v1553, %v1553
          %v1556 = vmul.f32 %v1554, %v1554
          %v1557 = vsel %vm1345, %v1555, 0.0
          %1558 = vadd.xlane.f32.xlu0 %v1557
          %v1559 = vpop.xlane.xlu0 %1558
          %v1560 = vsel %vm1345, %v1556, 0.0
          %1561 = vadd.xlane.f32.xlu0 %v1560
          %v1562 = vpop.xlane.xlu0 %1561
          %v1563 = vmul.f32 %v1559, %v1352
          %v1564 = vmul.f32 %v1562, %v1352
          %v1565 = vadd.f32 %v1563, 1e-05
          %v1566 = vadd.f32 %v1564, 1e-05
          %v1567 = vrsqrt.pop %v1565
          %v1568 = vrsqrt.pop %v1566
          %v1569 = vmul.f32 %v1553, %v1567
          %v1570 = vmul.f32 %v1554, %v1568
          %v1573 = vlaneseq
          %v1574 = vshrl.u32 %v1573, 7
          %v1575 = vsub.s32 0, %v1574
          %v1576 = vrot.slane %v1195, %v1575
          %v1577 = vlaneseq
          %v1578 = vshrl.u32 %v1577, 7
          %v1579 = vsub.s32 0, %v1578
          %v1580 = vrot.slane %v1196, %v1579
          %v1583 = vmul.f32 %v1569, %v1576
          %v1584 = vmul.f32 %v1570, %v1580
          %v1587 = vlaneseq
          %v1588 = vshrl.u32 %v1587, 7
          %v1589 = vsub.s32 0, %v1588
          %v1590 = vrot.slane %v1199, %v1589
          %v1591 = vlaneseq
          %v1592 = vshrl.u32 %v1591, 7
          %v1593 = vsub.s32 0, %v1592
          %v1594 = vrot.slane %v1200, %v1593
          %v1597 = vadd.f32 %v1583, %v1590
          %v1598 = vadd.f32 %v1584, %v1594
          %v1599 = vld [vmem:[%s15] sm:$0xf]
          %v1600 = vld [vmem:[%s15 + $0x4] sm:$0xf]
          %v1601 = vld [vmem:[%s15 + $0x8] sm:$0xf]
          %v1602 = vld [vmem:[%s15 + $0xc] sm:$0xf]
          %v1603 = vld [vmem:[%s15 + $0x10] sm:$0xf]
          %v1604 = vld [vmem:[%s15 + $0x14] sm:$0xf]
          %v1605 = vld [vmem:[%s15 + $0x18] sm:$0xf]
          %v1606 = vld [vmem:[%s15 + $0x1c] sm:$0xf]
          %v1607 = vpack.c.bf16 %v1597, %v1597
          %v1608 = vpack.c.bf16 %v1598, %v1598
          %v1613 = vunpack.c.l.b16 %v1603
          %v1614 = vunpack.c.l.b16 %v1604
          %v1615 = vunpack.c.l.b16 %v1605
          %v1616 = vunpack.c.l.b16 %v1606
          %v1617 = vpack.c.b16 %v1614, %v1613
          %v1618 = vpack.c.b16 %v1616, %v1615
          %v1622 = vsel %vm848, %v1608, 0
          %1624 = vmatprep.subr.bf16.mxu0 0
          %1625 = vmatpush1.bf16.msra.mxu0 %v1617
          %1626 = vmatprep.subr.bf16.mxu0 0
          %1627 = vmatpush1.bf16.msra.mxu0 %v1618
          %1628 = vmatprep.subr.bf16.mxu0 0
          %1629 = vmatpush1.bf16.msra.mxu0 0
          %1630 = vmatprep.subr.bf16.mxu0 0
          %1631 = vmatpush1.bf16.msra.mxu0 0
          %1632 = vmatprep.subr.bf16.mxu0 0
          %1633 = vmatpush1.bf16.msra.mxu0 0
          %1634 = vmatprep.subr.bf16.mxu0 0
          %1635 = vmatpush1.bf16.msra.mxu0 0
          %1636 = vmatprep.subr.bf16.mxu0 0
          %1637 = vmatpush1.bf16.msra.mxu0 0
          %1638 = vmatprep.subr.bf16.mxu0 0
          %1639 = vmatpush1.bf16.msra.mxu0 0
          %1640 = vmatprep.subr.bf16.mxu0 0
          %1641 = vmatpush1.bf16.msra.mxu0 0
          %1642 = vmatprep.subr.bf16.mxu0 0
          %1643 = vmatpush1.bf16.msra.mxu0 0
          %1644 = vmatprep.subr.bf16.mxu0 0
          %1645 = vmatpush1.bf16.msra.mxu0 0
          %1646 = vmatprep.subr.bf16.mxu0 0
          %1647 = vmatpush1.bf16.msra.mxu0 0
          %1648 = vmatprep.subr.bf16.mxu0 0
          %1649 = vmatpush1.bf16.msra.mxu0 0
          %1650 = vmatprep.subr.bf16.mxu0 0
          %1651 = vmatpush1.bf16.msra.mxu0 0
          %1652 = vmatprep.subr.bf16.mxu0 0
          %1653 = vmatpush1.bf16.msra.mxu0 0
          %1654 = vmatprep.subr.bf16.mxu0 0
          %1655 = vmatpush1.bf16.msra.mxu0 0
          %1656 = vmatprep.mubr.bf16.mxu0 0
          %1657 = vmatmul.mubr.bf16.gmra.mrb[0].mxu0 %v1622
          %v1658 = vpop.f32.mrb[0].mxu0
          %v1659 = vadd.f32 0.0, %v1658
          %v1660 = vpop.f32.mrb[0].mxu0
          %v1661 = vpop.f32.mrb[0].mxu0
          %v1662 = vpop.f32.mrb[0].mxu0
          %1663 = vdwg.mxu0
          %v1668 = vunpack.c.l.b16 %v1599
          %v1669 = vunpack.c.l.b16 %v1600
          %v1670 = vunpack.c.l.b16 %v1601
          %v1671 = vunpack.c.l.b16 %v1602
          %v1672 = vpack.c.b16 %v1669, %v1668
          %v1673 = vpack.c.b16 %v1671, %v1670
          %v1677 = vsel %vm848, %v1607, 0
          %1679 = vmatprep.subr.bf16.mxu0 0
          %1680 = vmatpush1.bf16.msra.mxu0 %v1672
          %1681 = vmatprep.subr.bf16.mxu0 0
          %1682 = vmatpush1.bf16.msra.mxu0 %v1673
          %1683 = vmatprep.subr.bf16.mxu0 0
          %1684 = vmatpush1.bf16.msra.mxu0 0
          %1685 = vmatprep.subr.bf16.mxu0 0
          %1686 = vmatpush1.bf16.msra.mxu0 0
          %1687 = vmatprep.subr.bf16.mxu0 0
          %1688 = vmatpush1.bf16.msra.mxu0 0
          %1689 = vmatprep.subr.bf16.mxu0 0
          %1690 = vmatpush1.bf16.msra.mxu0 0
          %1691 = vmatprep.subr.bf16.mxu0 0
          %1692 = vmatpush1.bf16.msra.mxu0 0
          %1693 = vmatprep.subr.bf16.mxu0 0
          %1694 = vmatpush1.bf16.msra.mxu0 0
          %1695 = vmatprep.subr.bf16.mxu0 0
          %1696 = vmatpush1.bf16.msra.mxu0 0
          %1697 = vmatprep.subr.bf16.mxu0 0
          %1698 = vmatpush1.bf16.msra.mxu0 0
          %1699 = vmatprep.subr.bf16.mxu0 0
          %1700 = vmatpush1.bf16.msra.mxu0 0
          %1701 = vmatprep.subr.bf16.mxu0 0
          %1702 = vmatpush1.bf16.msra.mxu0 0
          %1703 = vmatprep.subr.bf16.mxu0 0
          %1704 = vmatpush1.bf16.msra.mxu0 0
          %1705 = vmatprep.subr.bf16.mxu0 0
          %1706 = vmatpush1.bf16.msra.mxu0 0
          %1707 = vmatprep.subr.bf16.mxu0 0
          %1708 = vmatpush1.bf16.msra.mxu0 0
          %1709 = vmatprep.subr.bf16.mxu0 0
          %1710 = vmatpush1.bf16.msra.mxu0 0
          %1711 = vmatprep.mubr.bf16.mxu0 0
          %1712 = vmatmul.mubr.bf16.gmra.mrb[0].mxu0 %v1677
          %v1713 = vpop.f32.mrb[0].mxu0
          %v1714 = vadd.f32 %v1659, %v1713
          %v1715 = vpop.f32.mrb[0].mxu0
          %v1716 = vpop.f32.mrb[0].mxu0
          %v1717 = vpop.f32.mrb[0].mxu0
          %1718 = vdwg.mxu0
          %v1719 = vld [vmem:[%s16] sm:$0x1]
          %v1721 = vlaneseq
          %v1722 = vshrl.u32 %v1721, 7
          %v1723 = vsub.s32 0, %v1722
          %v1724 = vrot.slane %v1719, %v1723
          %v1726 = vadd.f32 %v1714, %v1724
          %1727 = vst [vmem:[#allocation24] sm:$0x3] %v1726
        $region144: #{tpu_custom_call.1} parent=87 // pred_fallthru
          _
        // Predicated region
        $region145: #{tpu_custom_call.1} parent=87 // pred_check
          %p1728 = pneg %p444
        $region146: #{tpu_custom_call.1} parent=87 // pred_check_branch
          %1730 = sbr.rel (%p1728) target = $region148
        $region147: #{tpu_custom_call.1} parent=87 // pred_region
          %s1732 = ssub.s32 32, 32
          %1733 = vsyncadd [#allocation6], %s1732
          %s1734 = smul.addr %s42, 32
          %s1735 = scalar_lea.hbm %s17, %s1734
          %s1737 = sshll.u32 [#allocation24], 4
          %s1738 = int_to_ptr.vmem [resolvable:$true] %s1737
          %1740 = dma.vmem_to_hbm [thread:$0]  %s1738, 32, %s1735, [#allocation6]
        $region148: #{tpu_custom_call.1} parent=87 // pred_fallthru
          _
        // Predicated region
        $region149: #{tpu_custom_call.1} parent=87 // pred_check
          %p1741 = pneg %p444
        $region150: #{tpu_custom_call.1} parent=87 // pred_check_branch
          %1743 = sbr.rel (%p1741) target = $region152
        $region151: #{tpu_custom_call.1} parent=87 // pred_region
          %1744 = dma.done [#allocation6], 32
        $region152: #{tpu_custom_call.1} parent=87 // pred_fallthru
          _
      $region88: #{tpu_custom_call.1} parent=5 // pred_fallthru
        _
      %p1745 = scmp.le.s32.totalorder 2, %s33
      // Predicated region
      $region153: #{tpu_custom_call.1} parent=5 // pred_check
        %p1746 = pneg %p1745
      $region154: #{tpu_custom_call.1} parent=5 // pred_check_branch
        %1748 = sbr.rel (%p1746) target = $region156
      $region155: #{tpu_custom_call.1} parent=5 // pred_region
        %s1749 = ssub.s32 %s33, 2
      $region156: #{tpu_custom_call.1} parent=5 // pred_fallthru
        _
    $region6: #{tpu_custom_call.1} parent=1 // loop_footer
      %s37 = sadd.s32 1, %s33
    $region7: #{tpu_custom_call.1} parent=1 // loop_footer_branch
      %32 = sbr.rel target = $region3
    $region8: #{tpu_custom_call.1} parent=1 // loop_exit
      _
    %1750 = vsyncpa [#allocation5], 1
    %s1751 = scalar_lea.sflag [#allocation5], 1
    %1752 = vsyncpa %s1751, 1
    %1753 = vsyncpa [#allocation8], 1
    %s1754 = scalar_lea.sflag [#allocation8], 1
    %1755 = vsyncpa %s1754, 1
    %1756 = vsyncpa [#allocation11], 1
    %1757 = vsyncpa [#allocation14], 1
    %1758 = vsyncpa [#allocation17], 1
    %1759 = vsyncpa [#allocation20], 1
    %1760 = vsyncpa [#allocation23], 1
    %1761 = vsyncpa [#allocation6], 1
    %s1762 = scalar_lea.sflag [#allocation6], 1
    %1763 = vsyncpa %s1762, 1

</llo_original>
